<compile_context>
chip_gen: v7x
topology: tpu7x:2x2x1
jax: 0.10.0
libtpu: 0.0.40
codegen_flags: <defaults>
</compile_context>

<pallas_src>
import jax
import jax.numpy as jnp
from jax.experimental import pallas as pl
from jax.experimental.pallas import tpu as pltpu


def _round_up(x: int, m: int) -> int:
    return ((x + m - 1) // m) * m


def _pick_batch_tile(batch: int) -> int:
    # Prefer big tiles (M dim of every MXU op), but keep grid >= 2 so the
    # "parallel" batch axis can shard across v7x's two TensorCores.
    for tb in (256, 128, 64, 32, 16, 8):
        if batch % tb == 0 and batch // tb >= 2:
            return tb
    for tb in (256, 128, 64, 32, 16, 8):
        if batch % tb == 0:
            return tb
    return batch  # block dim == full array dim is always legal


def scn_kernel(iw_ref, t_ref, w_ref, invw_ref, baseh_ref, basef_ref,
               out_ref, newh_ref, idx_ref):
    f32 = jnp.float32
    tb, Vp = iw_ref.shape
    depth = w_ref.shape[0]
    Dp = baseh_ref.shape[1]
    Op = basef_ref.shape[1]

    lane = jax.lax.broadcasted_iota(jnp.int32, (tb, Vp), 1)

    iw = iw_ref[...]            # (tb, Vp)   pad lanes = +1e30 (self-sustaining)
    t = t_ref[...]              # (Vp, Dp+Op+Wp) = [vu | vf | w_all.T]
    w_all = w_ref[...]          # (depth, Vp)  pad lanes 0
    invw_all = invw_ref[...]    # (depth, Vp)  pad lanes 1e20
    base_h = baseh_ref[...]     # (depth, Dp)  = w_all @ vu   (wrapper, HIGHEST)
    base_f = basef_ref[...]     # (depth, Op)  = w_all @ vf + biases

    firsts, wgaths, deltas_h, deltas_f, iw_gath = [], [], [], [], []

    # TODO(synk): for depth >~ 4 switch this unrolled loop to lax.fori_loop with
    # VMEM scratch slabs for deltas/wgath to bound live ranges.
    for i in range(depth):
        w = w_all[i:i + 1, :]
        inv_w = invw_all[i:i + 1, :]

        # ---- update_weights: torch.min over the visible dim ----
        wd = iw * inv_w                                     # pad: 1e30*1e20 -> +inf
        vals = jnp.min(wd, axis=1, keepdims=True)           # (tb, 1)
        first = jnp.min(jnp.where(wd == vals, lane, Vp),
                        axis=1, keepdims=True)              # first occurrence
        onehot = lane == first
        onehot_f = onehot.astype(f32)

        # ---- fused one-hot gather of [vu | vf | w_all.T] rows at idx_i ----
        g = jnp.dot(onehot_f, t, preferred_element_type=f32)   # (tb, Dp+Op+Wp)
        prev_h = g[:, :Dp]                                      # vu[idx_i[b]]
        prev_f = g[:, Dp:Dp + Op]                               # vf[idx_i[b]]
        wgath = g[:, Dp + Op:Dp + Op + depth]                   # w_all[k, idx_i[b]]

        # ---- update_h_mdl1 via low-rank corrections ----
        corr_h = jnp.zeros((tb, Dp), f32)
        corr_f = jnp.zeros((tb, Op), f32)
        for j in range(i):
            coef = wgaths[j][:, i:i + 1]                        # w_all[i, idx_j[b]]
            match = (firsts[j] == first).astype(f32)            # idx_j == idx_i
            corr_h = corr_h + coef * deltas_h[j]
            corr_f = corr_f + coef * deltas_f[j]
            prev_h = prev_h + match * deltas_h[j]
            prev_f = prev_f + match * deltas_f[j]

        new_h = base_h[i:i + 1, :] + corr_h                     # (tb, Dp)
        fw = base_f[i:i + 1, :] + corr_f                        # bias folded in base_f
        newh_ref[i] = new_h                                     # lane-dense slab

        # ---- iw update; keep gathered iw values at scattered rows in sync ----
        iw = jnp.where(onehot, vals, iw - vals * w)             # pad stays 1e30
        for j in range(i):
            iw_gath[j] = jnp.where(firsts[j] == first, vals,
                                   iw_gath[j] - vals * wgaths[j][:, i:i + 1])
        iw_gath.append(vals)                                    # iw[b, idx_i[b]]

        firsts.append(first)
        wgaths.append(wgath)
        deltas_h.append(new_h - prev_h)
        deltas_f.append(fw - prev_f)

    # ---- out = bmm(input_weights, f) = iw @ vf + scattered-row corrections ----
    vf = t[:, Dp:Dp + Op]
    out = jnp.dot(iw, vf, preferred_element_type=f32)           # (tb, Op) on MXU
    for j in range(depth):
        out = out + iw_gath[j] * deltas_f[j]
    out_ref[...] = out

    # ---- compact scatter-index metadata (tiny; masked store acceptable) ----
    col = jax.lax.broadcasted_iota(jnp.int32, (tb, depth), 1)
    idx = jnp.zeros((tb, depth), jnp.int32)
    for j in range(depth):
        idx = jnp.where(col == j, firsts[j], idx)
    idx_ref[...] = idx


def scn_multi_pallas(inp, visible_units, visible_fs, L, biases, *, batch_tile=None):
    """Runs the kernel; returns compact (out (B,O), new_h (depth,B,D), idx (B,depth))."""
    inp = jnp.asarray(inp, jnp.float32)
    visible_units = jnp.asarray(visible_units, jnp.float32)
    visible_fs = jnp.asarray(visible_fs, jnp.float32)
    L = jnp.asarray(L, jnp.float32)
    biases = jnp.asarray(biases, jnp.float32)

    B, D = inp.shape
    V, O = visible_fs.shape
    depth = L.shape[0]
    assert V == D + 1, "SCN_multi requires visible_num == input_dim + 1"

    Vp = _round_up(V, 128)
    Dp = _round_up(D, 128)
    Op = _round_up(O, 128)
    Wp = _round_up(depth, 128)
    Cp = Dp + Op + Wp
    tb = batch_tile if batch_tile is not None else _pick_batch_tile(B)
    assert B % tb == 0, "batch tile must divide batch"

    P = jax.lax.Precision.HIGHEST

    # ---- batch-invariant precompute, hoisted out of the (serial) kernel grid ----
    l = L - jnp.max(L, axis=1, keepdims=True)
    e = jnp.exp(l)
    w_all = e / jnp.sum(e, axis=1, keepdims=True)                     # (depth, V)

    w_p = jnp.zeros((depth, Vp), jnp.float32).at[:, :V].set(w_all)
    invw_p = 1.0 / (w_p + 1e-20)                                      # pad -> 1e20
    baseh_p = jnp.zeros((depth, Dp), jnp.float32).at[:, :D].set(
        jnp.dot(w_all, visible_units, precision=P))
    basef_p = jnp.zeros((depth, Op), jnp.float32).at[:, :O].set(
        jnp.dot(w_all, visible_fs, precision=P) + biases)

    # Fused gather table [vu | vf | w_all.T]; every slice offset is 128-aligned.
    tbl = jnp.zeros((Vp, Cp), jnp.float32)
    tbl = tbl.at[:V, :D].set(visible_units)
    tbl = tbl.at[:V, Dp:Dp + O].set(visible_fs)
    tbl = tbl.at[:V, Dp + Op:Dp + Op + depth].set(w_all.T)

    # iw0 = cat(1 - sum(inp), inp); pad lanes seeded with +1e30 so wd_pad = +inf
    # every step (never the min), iw_pad self-sustains, and iw_pad * vf_pad = 0
    # in the final contraction (vf pad rows are exactly zero).
    iw0 = jnp.full((B, Vp), 1e30, jnp.float32)
    iw0 = iw0.at[:, 0].set(1.0 - jnp.sum(inp, axis=1))
    iw0 = iw0.at[:, 1:V].set(inp)

    # TODO(synk): on v7x with large D/O, single-buffer the constant-index table
    # specs (pipeline_mode=pl.Buffered(1)) and feature-tile Dp/Op to respect the
    # 64 MiB/TC VMEM budget; unnecessary at these sizes.
    out_p, newh_p, idx = pl.pallas_call(
        scn_kernel,
        out_shape=(
            jax.ShapeDtypeStruct((B, Op), jnp.float32),
            jax.ShapeDtypeStruct((depth, B, Dp), jnp.float32),
            jax.ShapeDtypeStruct((B, depth), jnp.int32),
        ),
        grid=(B // tb,),
        in_specs=[
            pl.BlockSpec((tb, Vp), lambda b: (b, 0)),            # iw0 (batch tiled)
            pl.BlockSpec((Vp, Cp), lambda b: (0, 0)),            # [vu|vf|w.T] (replicated)
            pl.BlockSpec((depth, Vp), lambda b: (0, 0)),         # w_all
            pl.BlockSpec((depth, Vp), lambda b: (0, 0)),         # 1/(w_all+eps)
            pl.BlockSpec((depth, Dp), lambda b: (0, 0)),         # base_h
            pl.BlockSpec((depth, Op), lambda b: (0, 0)),         # base_f (+bias)
        ],
        out_specs=(
            pl.BlockSpec((tb, Op), lambda b: (b, 0)),            # out
            pl.BlockSpec((depth, tb, Dp), lambda b: (0, b, 0)),  # new_h per step
            pl.BlockSpec((tb, depth), lambda b: (b, 0)),         # scatter indices
        ),
        compiler_params=pltpu.CompilerParams(
            dimension_semantics=("parallel",),
            vmem_limit_bytes=48 * 1024 * 1024,
        ),
    )(iw0, tbl, w_p, invw_p, baseh_p, basef_p)

    return out_p[:, :O], newh_p[:, :, :D], idx


def scn_multi_forward(inp, visible_units, visible_fs, L, biases, *, batch_tile=None):
    """Mirrors SCN_multi.forward (model=1): returns (out (B,1,O), hidden_collect, last_h)."""
    out, newh, idx = scn_multi_pallas(inp, visible_units, visible_fs, L, biases,
                                      batch_tile=batch_tile)
    B, D = inp.shape
    V = visible_units.shape[0]
    depth = newh.shape[0]

    # Reconstruct the dense per-step h_old tensors lazily from compact kernel
    # metadata (the kernel never writes the (depth, B, V, D) slab to HBM).
    hidden_collect = []
    rows = jnp.arange(B)
    h = jnp.broadcast_to(jnp.asarray(visible_units, jnp.float32)[None], (B, V, D))
    for i in range(depth):
        hidden_collect.append([h, newh[i]])
        h = h.at[rows, idx[:, i]].set(newh[i])
    last_h = newh[depth - 1]
    return out[:, None, :], hidden_collect, last_h


# ---------------- pure-JAX reference (mirrors the PyTorch forward) ----------------
def scn_multi_ref(inp, visible_units, visible_fs, L, biases):
    B, D = inp.shape
    V, O = visible_fs.shape
    depth = L.shape[0]
    P = jax.lax.Precision.HIGHEST

    def softmax(x):
        e = jnp.exp(x - jnp.max(x, -1, keepdims=True))
        return e / jnp.sum(e, -1, keepdims=True)

    f = jnp.broadcast_to(visible_fs[None], (B, V, O))
    h = jnp.broadcast_to(visible_units[None], (B, V, D))
    iw = jnp.concatenate([1.0 - jnp.sum(inp, 1, keepdims=True), inp], 1)
    hidden, new_h = [], None
    for i in range(depth):
        w = softmax(L[i:i + 1])                                   # (1, V)
        wd = iw / (w + 1e-20)
        vals = jnp.min(wd, 1)
        idx = jnp.argmin(wd, 1)
        iw = (iw - vals[:, None] * w).at[jnp.arange(B), idx].set(vals)
        h_old = h
        new_h = jnp.einsum('v,bvd->bd', w[0], h, precision=P)
        fw = jnp.einsum('v,bvo->bo', w[0], f, precision=P) + biases[i]
        f = f.at[jnp.arange(B), idx].set(fw)
        h = h.at[jnp.arange(B), idx].set(new_h)
        hidden.append([h_old, h[jnp.arange(B), idx]])
    out = jnp.einsum('bv,bvo->bo', iw, f, precision=P)[:, None, :]
    return out, hidden, new_h


if __name__ == "__main__":
    # Deterministic small example (zero params from the PyTorch __init__ would be
    # degenerate, so parameters get small deterministic random values instead).
    B, input_dim, output_dim, depth = 16, 32, 8, 3
    visible_num = input_dim + 1

    key = jax.random.PRNGKey(0)
    k1, k2, k3, k4, k5 = jax.random.split(key, 5)
    inp = jax.random.uniform(k1, (B, input_dim), jnp.float32, 0.0, 0.1)
    visible_units = jax.random.normal(k2, (visible_num, input_dim), jnp.float32)
    visible_fs = jax.random.normal(k3, (visible_num, output_dim), jnp.float32)
    L = 0.5 * jax.random.normal(k4, (depth, visible_num), jnp.float32)
    biases = 0.1 * jax.random.normal(k5, (depth, output_dim), jnp.float32)
    # TODO(synk): bias_funcs (zero-filled nn.Linear) are never used in forward(); omitted.
    # TODO(synk): model=2 path (update_h_mdl2) not implemented; forward() defaults to model=1.

    # auto tile -> tb=8, grid=(2,): >=2 grid steps so the parallel axis can use
    # both v7x TensorCores while still matching the (8,128) sublane constraint.
    out, hidden_collect, last_h = scn_multi_forward(
        inp, visible_units, visible_fs, L, biases)
    jax.block_until_ready(out)
    jax.block_until_ready(last_h)

    ref_out, ref_hidden, ref_last_h = scn_multi_ref(inp, visible_units, visible_fs, L, biases)

    # MXU f32 contraction + low-rank-correction summation order vs VALU reference.
    atol = rtol = 2e-3
    assert jnp.allclose(out, ref_out, atol=atol, rtol=rtol), "out mismatch"
    assert jnp.allclose(last_h, ref_last_h, atol=atol, rtol=rtol), "last_h mismatch"
    for i in range(depth):
        assert jnp.allclose(hidden_collect[i][0], ref_hidden[i][0], atol=atol, rtol=rtol), \
            f"h_old[{i}] mismatch"
        assert jnp.allclose(hidden_collect[i][1], ref_hidden[i][1], atol=atol, rtol=rtol), \
            f"h_new[{i}] mismatch"

    print("KERNEL_OK")
</pallas_src>

<mosaic_0001>
module attributes {stable_mosaic.version = 11 : i64} {
  func.func @scn_kernel(%arg0: i32, %arg1: memref<8x128xf32, #tpu.memory_space<vmem>>, %arg2: memref<128x384xf32, #tpu.memory_space<vmem>>, %arg3: memref<3x128xf32, #tpu.memory_space<vmem>>, %arg4: memref<3x128xf32, #tpu.memory_space<vmem>>, %arg5: memref<3x128xf32, #tpu.memory_space<vmem>>, %arg6: memref<3x128xf32, #tpu.memory_space<vmem>>, %arg7: memref<8x128xf32, #tpu.memory_space<vmem>>, %arg8: memref<3x8x128xf32, #tpu.memory_space<vmem>>, %arg9: memref<8x3xi32, #tpu.memory_space<vmem>>) attributes {dimension_semantics = [#tpu.dimension_semantics<parallel>], iteration_bounds = array<i64: 2>, scalar_prefetch = 0 : i64, scratch_operands = 0 : i64, tpu.core_type = #tpu.core_type<tc>, window_params = [{transform_indices = @transform_0, window_bounds = array<i64: 8, 128>}, {pipeline_mode = #tpu.pipeline_mode<synchronous>, transform_indices = @transform_1, window_bounds = array<i64: 128, 384>}, {pipeline_mode = #tpu.pipeline_mode<synchronous>, transform_indices = @transform_2, window_bounds = array<i64: 3, 128>}, {pipeline_mode = #tpu.pipeline_mode<synchronous>, transform_indices = @transform_3, window_bounds = array<i64: 3, 128>}, {pipeline_mode = #tpu.pipeline_mode<synchronous>, transform_indices = @transform_4, window_bounds = array<i64: 3, 128>}, {pipeline_mode = #tpu.pipeline_mode<synchronous>, transform_indices = @transform_5, window_bounds = array<i64: 3, 128>}, {transform_indices = @transform_6, window_bounds = array<i64: 8, 128>}, {transform_indices = @transform_7, window_bounds = array<i64: 3, 8, 128>}, {transform_indices = @transform_8, window_bounds = array<i64: 8, 3>}]} {
    %0 = tpu.iota {dimensions = array<i32: 1>} : vector<8x128xi32>
    %c0 = arith.constant 0 : index
    %c0_0 = arith.constant 0 : index
    %1 = vector.load %arg1[%c0, %c0_0] : memref<8x128xf32, #tpu.memory_space<vmem>>, vector<8x128xf32>
    %c0_1 = arith.constant 0 : index
    %c0_2 = arith.constant 0 : index
    %2 = vector.load %arg2[%c0_1, %c0_2] : memref<128x384xf32, #tpu.memory_space<vmem>>, vector<128x384xf32>
    %c0_3 = arith.constant 0 : index
    %c0_4 = arith.constant 0 : index
    %3 = vector.load %arg3[%c0_3, %c0_4] : memref<3x128xf32, #tpu.memory_space<vmem>>, vector<3x128xf32>
    %c0_5 = arith.constant 0 : index
    %c0_6 = arith.constant 0 : index
    %4 = vector.load %arg4[%c0_5, %c0_6] : memref<3x128xf32, #tpu.memory_space<vmem>>, vector<3x128xf32>
    %c0_7 = arith.constant 0 : index
    %c0_8 = arith.constant 0 : index
    %5 = vector.load %arg5[%c0_7, %c0_8] : memref<3x128xf32, #tpu.memory_space<vmem>>, vector<3x128xf32>
    %c0_9 = arith.constant 0 : index
    %c0_10 = arith.constant 0 : index
    %6 = vector.load %arg6[%c0_9, %c0_10] : memref<3x128xf32, #tpu.memory_space<vmem>>, vector<3x128xf32>
    %7 = vector.extract_strided_slice %3 {offsets = [0, 0], sizes = [1, 128], strides = [1, 1]} : vector<3x128xf32> to vector<1x128xf32>
    %8 = vector.extract_strided_slice %4 {offsets = [0, 0], sizes = [1, 128], strides = [1, 1]} : vector<3x128xf32> to vector<1x128xf32>
    %9 = vector.broadcast %8 : vector<1x128xf32> to vector<8x128xf32>
    %10 = arith.mulf %1, %9 : vector<8x128xf32>
    %cst = arith.constant dense<0x7F800000> : vector<8xf32>
    %11 = vector.multi_reduction <minimumf>, %10, %cst [1] : vector<8x128xf32> to vector<8xf32>
    %12 = vector.shape_cast %11 : vector<8xf32> to vector<8x1xf32>
    %13 = vector.broadcast %12 : vector<8x1xf32> to vector<8x128xf32>
    %14 = arith.cmpf oeq, %10, %13 : vector<8x128xf32>
    %c128_i32 = arith.constant 128 : i32
    %15 = vector.broadcast %c128_i32 : i32 to vector<8x128xi32>
    %16 = arith.select %14, %0, %15 : vector<8x128xi1>, vector<8x128xi32>
    %cst_11 = arith.constant dense<2147483647> : vector<8xi32>
    %17 = vector.multi_reduction <minsi>, %16, %cst_11 [1] : vector<8x128xi32> to vector<8xi32>
    %18 = vector.shape_cast %17 : vector<8xi32> to vector<8x1xi32>
    %19 = vector.broadcast %18 : vector<8x1xi32> to vector<8x128xi32>
    %20 = arith.cmpi eq, %0, %19 : vector<8x128xi32>
    %21 = arith.extui %20 : vector<8x128xi1> to vector<8x128xi32>
    %22 = arith.sitofp %21 : vector<8x128xi32> to vector<8x128xf32>
    %cst_12 = arith.constant dense<0.000000e+00> : vector<8x384xf32>
    %23 = tpu.matmul %22, %2, %cst_12 {dimension_numbers = #tpu.dot_dimension_numbers<[1], [0], [0], [1], [0, 0, 1, 1], [], []>} : vector<8x128xf32>, vector<128x384xf32>, vector<8x384xf32> -> vector<8x384xf32>
    %24 = vector.extract_strided_slice %23 {offsets = [0, 0], sizes = [8, 128], strides = [1, 1]} : vector<8x384xf32> to vector<8x128xf32>
    %25 = vector.extract_strided_slice %23 {offsets = [0, 128], sizes = [8, 128], strides = [1, 1]} : vector<8x384xf32> to vector<8x128xf32>
    %26 = vector.extract_strided_slice %23 {offsets = [0, 256], sizes = [8, 3], strides = [1, 1]} : vector<8x384xf32> to vector<8x3xf32>
    %cst_13 = arith.constant 0.000000e+00 : f32
    %27 = vector.broadcast %cst_13 : f32 to vector<8x128xf32>
    %cst_14 = arith.constant 0.000000e+00 : f32
    %28 = vector.broadcast %cst_14 : f32 to vector<8x128xf32>
    %29 = vector.extract_strided_slice %5 {offsets = [0, 0], sizes = [1, 128], strides = [1, 1]} : vector<3x128xf32> to vector<1x128xf32>
    %30 = vector.broadcast %29 : vector<1x128xf32> to vector<8x128xf32>
    %31 = arith.addf %30, %27 : vector<8x128xf32>
    %32 = vector.extract_strided_slice %6 {offsets = [0, 0], sizes = [1, 128], strides = [1, 1]} : vector<3x128xf32> to vector<1x128xf32>
    %33 = vector.broadcast %32 : vector<1x128xf32> to vector<8x128xf32>
    %34 = arith.addf %33, %28 : vector<8x128xf32>
    %c0_15 = arith.constant 0 : index
    %c0_16 = arith.constant 0 : index
    %c0_17 = arith.constant 0 : index
    %35 = vector.load %arg8[%c0_15, %c0_16, %c0_17] : memref<3x8x128xf32, #tpu.memory_space<vmem>>, vector<1x8x128xf32>
    %36 = vector.shape_cast %35 : vector<1x8x128xf32> to vector<8x128xf32>
    %37 = vector.shape_cast %31 : vector<8x128xf32> to vector<1x8x128xf32>
    tpu.vector_store %arg8[%c0_15, %c0_16, %c0_17], %37 {strides = array<i32>} : memref<3x8x128xf32, #tpu.memory_space<vmem>>, vector<1x8x128xf32>,
    %38 = vector.broadcast %12 : vector<8x1xf32> to vector<8x128xf32>
    %39 = vector.broadcast %7 : vector<1x128xf32> to vector<8x128xf32>
    %40 = arith.mulf %38, %39 : vector<8x128xf32>
    %41 = arith.subf %1, %40 : vector<8x128xf32>
    %42 = vector.shape_cast %12 : vector<8x1xf32> to vector<8x1xf32>
    %43 = vector.broadcast %42 : vector<8x1xf32> to vector<8x128xf32>
    %44 = arith.select %20, %43, %41 : vector<8x128xi1>, vector<8x128xf32>
    %45 = arith.subf %31, %24 : vector<8x128xf32>
    %46 = arith.subf %34, %25 : vector<8x128xf32>
    %47 = vector.extract_strided_slice %3 {offsets = [1, 0], sizes = [1, 128], strides = [1, 1]} : vector<3x128xf32> to vector<1x128xf32>
    %48 = vector.extract_strided_slice %4 {offsets = [1, 0], sizes = [1, 128], strides = [1, 1]} : vector<3x128xf32> to vector<1x128xf32>
    %49 = vector.broadcast %48 : vector<1x128xf32> to vector<8x128xf32>
    %50 = arith.mulf %44, %49 : vector<8x128xf32>
    %cst_18 = arith.constant dense<0x7F800000> : vector<8xf32>
    %51 = vector.multi_reduction <minimumf>, %50, %cst_18 [1] : vector<8x128xf32> to vector<8xf32>
    %52 = vector.shape_cast %51 : vector<8xf32> to vector<8x1xf32>
    %53 = vector.broadcast %52 : vector<8x1xf32> to vector<8x128xf32>
    %54 = arith.cmpf oeq, %50, %53 : vector<8x128xf32>
    %c128_i32_19 = arith.constant 128 : i32
    %55 = vector.broadcast %c128_i32_19 : i32 to vector<8x128xi32>
    %56 = arith.select %54, %0, %55 : vector<8x128xi1>, vector<8x128xi32>
    %cst_20 = arith.constant dense<2147483647> : vector<8xi32>
    %57 = vector.multi_reduction <minsi>, %56, %cst_20 [1] : vector<8x128xi32> to vector<8xi32>
    %58 = vector.shape_cast %57 : vector<8xi32> to vector<8x1xi32>
    %59 = vector.broadcast %58 : vector<8x1xi32> to vector<8x128xi32>
    %60 = arith.cmpi eq, %0, %59 : vector<8x128xi32>
    %61 = arith.extui %60 : vector<8x128xi1> to vector<8x128xi32>
    %62 = arith.sitofp %61 : vector<8x128xi32> to vector<8x128xf32>
    %cst_21 = arith.constant dense<0.000000e+00> : vector<8x384xf32>
    %63 = tpu.matmul %62, %2, %cst_21 {dimension_numbers = #tpu.dot_dimension_numbers<[1], [0], [0], [1], [0, 0, 1, 1], [], []>} : vector<8x128xf32>, vector<128x384xf32>, vector<8x384xf32> -> vector<8x384xf32>
    %64 = vector.extract_strided_slice %63 {offsets = [0, 0], sizes = [8, 128], strides = [1, 1]} : vector<8x384xf32> to vector<8x128xf32>
    %65 = vector.extract_strided_slice %63 {offsets = [0, 128], sizes = [8, 128], strides = [1, 1]} : vector<8x384xf32> to vector<8x128xf32>
    %66 = vector.extract_strided_slice %63 {offsets = [0, 256], sizes = [8, 3], strides = [1, 1]} : vector<8x384xf32> to vector<8x3xf32>
    %cst_22 = arith.constant 0.000000e+00 : f32
    %67 = vector.broadcast %cst_22 : f32 to vector<8x128xf32>
    %cst_23 = arith.constant 0.000000e+00 : f32
    %68 = vector.broadcast %cst_23 : f32 to vector<8x128xf32>
    %69 = vector.extract_strided_slice %26 {offsets = [0, 1], sizes = [8, 1], strides = [1, 1]} : vector<8x3xf32> to vector<8x1xf32>
    %70 = arith.cmpi eq, %18, %58 : vector<8x1xi32>
    %71 = arith.extui %70 : vector<8x1xi1> to vector<8x1xi32>
    %72 = arith.sitofp %71 : vector<8x1xi32> to vector<8x1xf32>
    %73 = vector.broadcast %69 : vector<8x1xf32> to vector<8x128xf32>
    %74 = arith.mulf %73, %45 : vector<8x128xf32>
    %75 = arith.addf %67, %74 : vector<8x128xf32>
    %76 = vector.broadcast %69 : vector<8x1xf32> to vector<8x128xf32>
    %77 = arith.mulf %76, %46 : vector<8x128xf32>
    %78 = arith.addf %68, %77 : vector<8x128xf32>
    %79 = vector.broadcast %72 : vector<8x1xf32> to vector<8x128xf32>
    %80 = arith.mulf %79, %45 : vector<8x128xf32>
    %81 = arith.addf %64, %80 : vector<8x128xf32>
    %82 = vector.broadcast %72 : vector<8x1xf32> to vector<8x128xf32>
    %83 = arith.mulf %82, %46 : vector<8x128xf32>
    %84 = arith.addf %65, %83 : vector<8x128xf32>
    %85 = vector.extract_strided_slice %5 {offsets = [1, 0], sizes = [1, 128], strides = [1, 1]} : vector<3x128xf32> to vector<1x128xf32>
    %86 = vector.broadcast %85 : vector<1x128xf32> to vector<8x128xf32>
    %87 = arith.addf %86, %75 : vector<8x128xf32>
    %88 = vector.extract_strided_slice %6 {offsets = [1, 0], sizes = [1, 128], strides = [1, 1]} : vector<3x128xf32> to vector<1x128xf32>
    %89 = vector.broadcast %88 : vector<1x128xf32> to vector<8x128xf32>
    %90 = arith.addf %89, %78 : vector<8x128xf32>
    %c1 = arith.constant 1 : index
    %c0_24 = arith.constant 0 : index
    %c0_25 = arith.constant 0 : index
    %91 = vector.load %arg8[%c1, %c0_24, %c0_25] : memref<3x8x128xf32, #tpu.memory_space<vmem>>, vector<1x8x128xf32>
    %92 = vector.shape_cast %91 : vector<1x8x128xf32> to vector<8x128xf32>
    %93 = vector.shape_cast %87 : vector<8x128xf32> to vector<1x8x128xf32>
    tpu.vector_store %arg8[%c1, %c0_24, %c0_25], %93 {strides = array<i32>} : memref<3x8x128xf32, #tpu.memory_space<vmem>>, vector<1x8x128xf32>,
    %94 = vector.broadcast %52 : vector<8x1xf32> to vector<8x128xf32>
    %95 = vector.broadcast %47 : vector<1x128xf32> to vector<8x128xf32>
    %96 = arith.mulf %94, %95 : vector<8x128xf32>
    %97 = arith.subf %44, %96 : vector<8x128xf32>
    %98 = vector.shape_cast %52 : vector<8x1xf32> to vector<8x1xf32>
    %99 = vector.broadcast %98 : vector<8x1xf32> to vector<8x128xf32>
    %100 = arith.select %60, %99, %97 : vector<8x128xi1>, vector<8x128xf32>
    %101 = arith.cmpi eq, %18, %58 : vector<8x1xi32>
    %102 = vector.extract_strided_slice %26 {offsets = [0, 1], sizes = [8, 1], strides = [1, 1]} : vector<8x3xf32> to vector<8x1xf32>
    %103 = arith.mulf %52, %102 : vector<8x1xf32>
    %104 = arith.subf %12, %103 : vector<8x1xf32>
    %105 = arith.select %101, %52, %104 : vector<8x1xi1>, vector<8x1xf32>
    %106 = arith.subf %87, %81 : vector<8x128xf32>
    %107 = arith.subf %90, %84 : vector<8x128xf32>
    %108 = vector.extract_strided_slice %3 {offsets = [2, 0], sizes = [1, 128], strides = [1, 1]} : vector<3x128xf32> to vector<1x128xf32>
    %109 = vector.extract_strided_slice %4 {offsets = [2, 0], sizes = [1, 128], strides = [1, 1]} : vector<3x128xf32> to vector<1x128xf32>
    %110 = vector.broadcast %109 : vector<1x128xf32> to vector<8x128xf32>
    %111 = arith.mulf %100, %110 : vector<8x128xf32>
    %cst_26 = arith.constant dense<0x7F800000> : vector<8xf32>
    %112 = vector.multi_reduction <minimumf>, %111, %cst_26 [1] : vector<8x128xf32> to vector<8xf32>
    %113 = vector.shape_cast %112 : vector<8xf32> to vector<8x1xf32>
    %114 = vector.broadcast %113 : vector<8x1xf32> to vector<8x128xf32>
    %115 = arith.cmpf oeq, %111, %114 : vector<8x128xf32>
    %c128_i32_27 = arith.constant 128 : i32
    %116 = vector.broadcast %c128_i32_27 : i32 to vector<8x128xi32>
    %117 = arith.select %115, %0, %116 : vector<8x128xi1>, vector<8x128xi32>
    %cst_28 = arith.constant dense<2147483647> : vector<8xi32>
    %118 = vector.multi_reduction <minsi>, %117, %cst_28 [1] : vector<8x128xi32> to vector<8xi32>
    %119 = vector.shape_cast %118 : vector<8xi32> to vector<8x1xi32>
    %120 = vector.broadcast %119 : vector<8x1xi32> to vector<8x128xi32>
    %121 = arith.cmpi eq, %0, %120 : vector<8x128xi32>
    %122 = arith.extui %121 : vector<8x128xi1> to vector<8x128xi32>
    %123 = arith.sitofp %122 : vector<8x128xi32> to vector<8x128xf32>
    %cst_29 = arith.constant dense<0.000000e+00> : vector<8x384xf32>
    %124 = tpu.matmul %123, %2, %cst_29 {dimension_numbers = #tpu.dot_dimension_numbers<[1], [0], [0], [1], [0, 0, 1, 1], [], []>} : vector<8x128xf32>, vector<128x384xf32>, vector<8x384xf32> -> vector<8x384xf32>
    %125 = vector.extract_strided_slice %124 {offsets = [0, 128], sizes = [8, 128], strides = [1, 1]} : vector<8x384xf32> to vector<8x128xf32>
    %cst_30 = arith.constant 0.000000e+00 : f32
    %126 = vector.broadcast %cst_30 : f32 to vector<8x128xf32>
    %cst_31 = arith.constant 0.000000e+00 : f32
    %127 = vector.broadcast %cst_31 : f32 to vector<8x128xf32>
    %128 = vector.extract_strided_slice %26 {offsets = [0, 2], sizes = [8, 1], strides = [1, 1]} : vector<8x3xf32> to vector<8x1xf32>
    %129 = arith.cmpi eq, %18, %119 : vector<8x1xi32>
    %130 = arith.extui %129 : vector<8x1xi1> to vector<8x1xi32>
    %131 = arith.sitofp %130 : vector<8x1xi32> to vector<8x1xf32>
    %132 = vector.broadcast %128 : vector<8x1xf32> to vector<8x128xf32>
    %133 = arith.mulf %132, %45 : vector<8x128xf32>
    %134 = arith.addf %126, %133 : vector<8x128xf32>
    %135 = vector.broadcast %128 : vector<8x1xf32> to vector<8x128xf32>
    %136 = arith.mulf %135, %46 : vector<8x128xf32>
    %137 = arith.addf %127, %136 : vector<8x128xf32>
    %138 = vector.broadcast %131 : vector<8x1xf32> to vector<8x128xf32>
    %139 = arith.mulf %138, %46 : vector<8x128xf32>
    %140 = arith.addf %125, %139 : vector<8x128xf32>
    %141 = vector.extract_strided_slice %66 {offsets = [0, 2], sizes = [8, 1], strides = [1, 1]} : vector<8x3xf32> to vector<8x1xf32>
    %142 = arith.cmpi eq, %58, %119 : vector<8x1xi32>
    %143 = arith.extui %142 : vector<8x1xi1> to vector<8x1xi32>
    %144 = arith.sitofp %143 : vector<8x1xi32> to vector<8x1xf32>
    %145 = vector.broadcast %141 : vector<8x1xf32> to vector<8x128xf32>
    %146 = arith.mulf %145, %106 : vector<8x128xf32>
    %147 = arith.addf %134, %146 : vector<8x128xf32>
    %148 = vector.broadcast %141 : vector<8x1xf32> to vector<8x128xf32>
    %149 = arith.mulf %148, %107 : vector<8x128xf32>
    %150 = arith.addf %137, %149 : vector<8x128xf32>
    %151 = vector.broadcast %144 : vector<8x1xf32> to vector<8x128xf32>
    %152 = arith.mulf %151, %107 : vector<8x128xf32>
    %153 = arith.addf %140, %152 : vector<8x128xf32>
    %154 = vector.extract_strided_slice %5 {offsets = [2, 0], sizes = [1, 128], strides = [1, 1]} : vector<3x128xf32> to vector<1x128xf32>
    %155 = vector.broadcast %154 : vector<1x128xf32> to vector<8x128xf32>
    %156 = arith.addf %155, %147 : vector<8x128xf32>
    %157 = vector.extract_strided_slice %6 {offsets = [2, 0], sizes = [1, 128], strides = [1, 1]} : vector<3x128xf32> to vector<1x128xf32>
    %158 = vector.broadcast %157 : vector<1x128xf32> to vector<8x128xf32>
    %159 = arith.addf %158, %150 : vector<8x128xf32>
    %c2 = arith.constant 2 : index
    %c0_32 = arith.constant 0 : index
    %c0_33 = arith.constant 0 : index
    %160 = vector.load %arg8[%c2, %c0_32, %c0_33] : memref<3x8x128xf32, #tpu.memory_space<vmem>>, vector<1x8x128xf32>
    %161 = vector.shape_cast %160 : vector<1x8x128xf32> to vector<8x128xf32>
    %162 = vector.shape_cast %156 : vector<8x128xf32> to vector<1x8x128xf32>
    tpu.vector_store %arg8[%c2, %c0_32, %c0_33], %162 {strides = array<i32>} : memref<3x8x128xf32, #tpu.memory_space<vmem>>, vector<1x8x128xf32>,
    %163 = vector.broadcast %113 : vector<8x1xf32> to vector<8x128xf32>
    %164 = vector.broadcast %108 : vector<1x128xf32> to vector<8x128xf32>
    %165 = arith.mulf %163, %164 : vector<8x128xf32>
    %166 = arith.subf %100, %165 : vector<8x128xf32>
    %167 = vector.shape_cast %113 : vector<8x1xf32> to vector<8x1xf32>
    %168 = vector.broadcast %167 : vector<8x1xf32> to vector<8x128xf32>
    %169 = arith.select %121, %168, %166 : vector<8x128xi1>, vector<8x128xf32>
    %170 = arith.cmpi eq, %18, %119 : vector<8x1xi32>
    %171 = vector.extract_strided_slice %26 {offsets = [0, 2], sizes = [8, 1], strides = [1, 1]} : vector<8x3xf32> to vector<8x1xf32>
    %172 = arith.mulf %113, %171 : vector<8x1xf32>
    %173 = arith.subf %105, %172 : vector<8x1xf32>
    %174 = arith.select %170, %113, %173 : vector<8x1xi1>, vector<8x1xf32>
    %175 = arith.cmpi eq, %58, %119 : vector<8x1xi32>
    %176 = vector.extract_strided_slice %66 {offsets = [0, 2], sizes = [8, 1], strides = [1, 1]} : vector<8x3xf32> to vector<8x1xf32>
    %177 = arith.mulf %113, %176 : vector<8x1xf32>
    %178 = arith.subf %52, %177 : vector<8x1xf32>
    %179 = arith.select %175, %113, %178 : vector<8x1xi1>, vector<8x1xf32>
    %180 = arith.subf %159, %153 : vector<8x128xf32>
    %181 = vector.extract_strided_slice %2 {offsets = [0, 128], sizes = [128, 128], strides = [1, 1]} : vector<128x384xf32> to vector<128x128xf32>
    %cst_34 = arith.constant dense<0.000000e+00> : vector<8x128xf32>
    %182 = tpu.matmul %169, %181, %cst_34 {dimension_numbers = #tpu.dot_dimension_numbers<[1], [0], [0], [1], [0, 0, 1, 1], [], []>} : vector<8x128xf32>, vector<128x128xf32>, vector<8x128xf32> -> vector<8x128xf32>
    %183 = vector.broadcast %174 : vector<8x1xf32> to vector<8x128xf32>
    %184 = arith.mulf %183, %46 : vector<8x128xf32>
    %185 = arith.addf %182, %184 : vector<8x128xf32>
    %186 = vector.broadcast %179 : vector<8x1xf32> to vector<8x128xf32>
    %187 = arith.mulf %186, %107 : vector<8x128xf32>
    %188 = arith.addf %185, %187 : vector<8x128xf32>
    %189 = vector.broadcast %113 : vector<8x1xf32> to vector<8x128xf32>
    %190 = arith.mulf %189, %180 : vector<8x128xf32>
    %191 = arith.addf %188, %190 : vector<8x128xf32>
    %c0_35 = arith.constant 0 : index
    %c0_36 = arith.constant 0 : index
    %192 = vector.load %arg7[%c0_35, %c0_36] : memref<8x128xf32, #tpu.memory_space<vmem>>, vector<8x128xf32>
    tpu.vector_store %arg7[%c0_35, %c0_36], %191 {strides = array<i32>} : memref<8x128xf32, #tpu.memory_space<vmem>>, vector<8x128xf32>,
    %193 = tpu.iota {dimensions = array<i32: 1>} : vector<8x3xi32>
    %c0_i32 = arith.constant 0 : i32
    %194 = vector.broadcast %c0_i32 : i32 to vector<8x3xi32>
    %c0_i32_37 = arith.constant 0 : i32
    %195 = vector.broadcast %c0_i32_37 : i32 to vector<8x3xi32>
    %196 = arith.cmpi eq, %193, %195 : vector<8x3xi32>
    %197 = vector.shape_cast %18 : vector<8x1xi32> to vector<8x1xi32>
    %198 = vector.broadcast %197 : vector<8x1xi32> to vector<8x3xi32>
    %199 = arith.select %196, %198, %194 : vector<8x3xi1>, vector<8x3xi32>
    %c1_i32 = arith.constant 1 : i32
    %200 = vector.broadcast %c1_i32 : i32 to vector<8x3xi32>
    %201 = arith.cmpi eq, %193, %200 : vector<8x3xi32>
    %202 = vector.shape_cast %58 : vector<8x1xi32> to vector<8x1xi32>
    %203 = vector.broadcast %202 : vector<8x1xi32> to vector<8x3xi32>
    %204 = arith.select %201, %203, %199 : vector<8x3xi1>, vector<8x3xi32>
    %c2_i32 = arith.constant 2 : i32
    %205 = vector.broadcast %c2_i32 : i32 to vector<8x3xi32>
    %206 = arith.cmpi eq, %193, %205 : vector<8x3xi32>
    %207 = vector.shape_cast %119 : vector<8x1xi32> to vector<8x1xi32>
    %208 = vector.broadcast %207 : vector<8x1xi32> to vector<8x3xi32>
    %209 = arith.select %206, %208, %204 : vector<8x3xi1>, vector<8x3xi32>
    %c0_38 = arith.constant 0 : index
    %c0_39 = arith.constant 0 : index
    %210 = vector.load %arg9[%c0_38, %c0_39] : memref<8x3xi32, #tpu.memory_space<vmem>>, vector<8x3xi32>
    tpu.vector_store %arg9[%c0_38, %c0_39], %209 {strides = array<i32>} : memref<8x3xi32, #tpu.memory_space<vmem>>, vector<8x3xi32>,
    return
  }
  func.func @transform_0(%arg0: i32) -> (i32, i32) {
    %c0_i32 = arith.constant 0 : i32
    %c0_i32_0 = arith.constant 0 : i32
    return %arg0, %c0_i32 : i32, i32
  }
  func.func @transform_1(%arg0: i32) -> (i32, i32) {
    %c0_i32 = arith.constant 0 : i32
    %c0_i32_0 = arith.constant 0 : i32
    %c0_i32_1 = arith.constant 0 : i32
    return %c0_i32, %c0_i32_0 : i32, i32
  }
  func.func @transform_2(%arg0: i32) -> (i32, i32) {
    %c0_i32 = arith.constant 0 : i32
    %c0_i32_0 = arith.constant 0 : i32
    %c0_i32_1 = arith.constant 0 : i32
    return %c0_i32, %c0_i32_0 : i32, i32
  }
  func.func @transform_3(%arg0: i32) -> (i32, i32) {
    %c0_i32 = arith.constant 0 : i32
    %c0_i32_0 = arith.constant 0 : i32
    %c0_i32_1 = arith.constant 0 : i32
    return %c0_i32, %c0_i32_0 : i32, i32
  }
  func.func @transform_4(%arg0: i32) -> (i32, i32) {
    %c0_i32 = arith.constant 0 : i32
    %c0_i32_0 = arith.constant 0 : i32
    %c0_i32_1 = arith.constant 0 : i32
    return %c0_i32, %c0_i32_0 : i32, i32
  }
  func.func @transform_5(%arg0: i32) -> (i32, i32) {
    %c0_i32 = arith.constant 0 : i32
    %c0_i32_0 = arith.constant 0 : i32
    %c0_i32_1 = arith.constant 0 : i32
    return %c0_i32, %c0_i32_0 : i32, i32
  }
  func.func @transform_6(%arg0: i32) -> (i32, i32) {
    %c0_i32 = arith.constant 0 : i32
    %c0_i32_0 = arith.constant 0 : i32
    return %arg0, %c0_i32 : i32, i32
  }
  func.func @transform_7(%arg0: i32) -> (i32, i32, i32) {
    %c0_i32 = arith.constant 0 : i32
    %c0_i32_0 = arith.constant 0 : i32
    %c0_i32_1 = arith.constant 0 : i32
    return %c0_i32, %arg0, %c0_i32_0 : i32, i32, i32
  }
  func.func @transform_8(%arg0: i32) -> (i32, i32) {
    %c0_i32 = arith.constant 0 : i32
    %c0_i32_0 = arith.constant 0 : i32
    return %arg0, %c0_i32 : i32, i32
  }
}

</mosaic_0001>

<llo_original>
// kernel: tpu_custom_call.1
$region0: #{tpu_custom_call.1}
  #allocation0 [shape = 'u32[]', space=smem, size = 0x4, offset = 0x4, fixed_abs, tag = 'smem constant byte address 0x4 - core index']
  #allocation1 [shape = 'u32[144,128]{1,0:T(1,128)}', space=vmem, size = 0x12000, scoped, tag = 'internal scratch']
  %s0 = inlined_call_operand.hbm [shape: f32[16,128], index: 0, kind: input, shape index: {}]
  %s1 = inlined_call_operand.hbm [shape: f32[128,384], index: 1, kind: input, shape index: {}]
  %s2 = inlined_call_operand.vmem [shape: f32[3,128], index: 2, kind: input, shape index: {}]
  %s3 = inlined_call_operand.vmem [shape: f32[3,128], index: 3, kind: input, shape index: {}]
  %s4 = inlined_call_operand.vmem [shape: f32[3,128], index: 4, kind: input, shape index: {}]
  %s5 = inlined_call_operand.vmem [shape: f32[3,128], index: 5, kind: input, shape index: {}]
  %s6 = inlined_call_operand.hbm [shape: f32[16,128], index: 6, kind: output, shape index: {0}]
  %s7 = inlined_call_operand.hbm [shape: f32[3,16,128], index: 7, kind: output, shape index: {1}]
  %s8 = inlined_call_operand.vmem [shape: s32[16,3], index: 8, kind: output, shape index: {2}]
  %9 = xla_tuple %s6, %s7, %s8
  %s10 = sld [smem:[#allocation0]]
  $region81: #{tpu_custom_call.1} parent=0
    _
  %s12 = ssub.s32 1, %s10
  %s13 = scalar_select 0, %s12, %s10
  $region1: #{tpu_custom_call.1} parent=0
    #allocation2 [shape = 'u8[8192]{0}', space=vmem, size = 0x2000, scoped, tag = 'input window, operand 0']
    #allocation3 [shape = 's32[2]{0}', space=sflag, size = 0x8, scoped, tag = 'scoped memory for tpu_custom_call.1']
    #allocation4 [shape = 's32[2]{0}', space=sflag, size = 0x8, scoped, tag = 'scoped memory for tpu_custom_call.1']
    #allocation5 [shape = 'u8[196608]{0}', space=vmem, size = 0x30000, scoped, tag = 'input window, operand 1, single buffered']
    #allocation6 [shape = 's32[1]{0}', space=sflag, size = 0x4, scoped, tag = 'scoped memory for tpu_custom_call.1']
    #allocation7 [shape = 'u8[8192]{0}', space=vmem, size = 0x2000, scoped, tag = 'output window, operand 0']
    #allocation8 [shape = 'u8[24576]{0}', space=vmem, size = 0x6000, scoped, tag = 'output window, operand 1']
    #allocation9 [shape = 's32[2]{0}', space=sflag, size = 0x8, scoped, tag = 'scoped memory for tpu_custom_call.1']
    %14 = vsyncpa [#allocation3], 0
    %s15 = scalar_lea.sflag [#allocation3], 1
    %16 = vsyncpa %s15, 0
    %17 = vsyncpa [#allocation6], 0
    %18 = vsyncpa [#allocation4], 0
    %s19 = scalar_lea.sflag [#allocation4], 1
    %20 = vsyncpa %s19, 0
    %21 = vsyncpa [#allocation9], 0
    %s22 = scalar_lea.sflag [#allocation9], 1
    %23 = vsyncpa %s22, 0
    loop: start=0, step=1, limit=4
    $region2: #{tpu_custom_call.1} parent=1 // loop_pre_header
      _
    $region3: #{tpu_custom_call.1} parent=1 // loop_header
      %s25 = sphi 0, %s29
      %p26 = scmp.ge.s32.totalorder %s25, 4
      %s35 = sphi 0, %s37
      %s38 = sphi 0, %s35
      %s39 = sphi 0, %s38
      %s55 = sphi 0, %s39
      %s59 = sphi 0, %s59
      %s61 = sphi 0, %s59
      %s62 = sphi 0, %s61
      %s76 = sphi 0, %s62
      %s80 = sphi 0, %s80
      %s82 = sphi 0, %s80
      %s83 = sphi 0, %s82
      %s97 = sphi 0, %s83
      %s101 = sphi 0, %s101
      %s103 = sphi 0, %s101
      %s104 = sphi 0, %s103
      %s118 = sphi 0, %s104
      %s122 = sphi 0, %s122
      %s124 = sphi 0, %s122
      %s125 = sphi 0, %s124
      %s139 = sphi 0, %s125
      %s143 = sphi 0, %s143
      %s145 = sphi 0, %s143
      %s146 = sphi 0, %s145
      %s160 = sphi 0, %s146
      %s166 = sphi 0, %s168
      %s169 = sphi 0, %s166
      %s170 = sphi 0, %s169
      %s186 = sphi 0, %s170
      %s192 = sphi 0, %s194
      %s195 = sphi 0, %s192
      %s196 = sphi 0, %s195
      %s212 = sphi 0, %s196
      %s218 = sphi 0, %s220
      %s221 = sphi 0, %s218
      %s222 = sphi 0, %s221
      %s238 = sphi 0, %s222
    $region4: #{tpu_custom_call.1} parent=1 // loop_header_branch
      %28 = sbr.rel (%p26) target = $region8
    $region5: #{tpu_custom_call.1} parent=1 // loop_body
      %s30 = ssub.s32 %s25, 1
      %s31 = ssub.s32 %s25, 2
      %s32 = sadd.s32 %s25, 1
      %s33 = ssub.s32 %s25, %s32
      %p34 = scmp.eq.s32.totalorder %s33, 0
      %s36 = sadd.s32 %s35, 1
      %s37 = scalar_select %p34, %s35, %s36
      %p40 = pneg %p34
      %p41 = scmp.eq.s32.totalorder %s25, 1
      %p42 = por %p40, %p41
      %p43 = scmp.ne.s32.totalorder %s35, %s38
      %p44 = scmp.eq.s32.totalorder %s25, 0
      %p45 = por %p43, %p44
      %p46 = scmp.ne.s32.totalorder %s35, %s38
      %p47 = scmp.eq.s32.totalorder %s30, 1
      %p48 = por %p46, %p47
      %p49 = scmp.ne.s32.totalorder %s38, %s39
      %p50 = scmp.eq.s32.totalorder %s30, 0
      %p51 = por %p49, %p50
      %p52 = scmp.ne.s32.totalorder %s38, %s39
      %p53 = scmp.eq.s32.totalorder %s31, 1
      %p54 = por %p52, %p53
      %p56 = scmp.ne.s32.totalorder %s39, %s55
      %p57 = scmp.eq.s32.totalorder %s31, 0
      %p58 = por %p56, %p57
      %s60 = sadd.s32 %s59, 1
      %p63 = scmp.eq.s32.totalorder %s25, 1
      %p64 = scmp.ne.s32.totalorder %s59, %s61
      %p65 = scmp.eq.s32.totalorder %s25, 0
      %p66 = por %p64, %p65
      %p67 = scmp.ne.s32.totalorder %s59, %s61
      %p68 = scmp.eq.s32.totalorder %s30, 1
      %p69 = por %p67, %p68
      %p70 = scmp.ne.s32.totalorder %s61, %s62
      %p71 = scmp.eq.s32.totalorder %s30, 0
      %p72 = por %p70, %p71
      %p73 = scmp.ne.s32.totalorder %s61, %s62
      %p74 = scmp.eq.s32.totalorder %s31, 1
      %p75 = por %p73, %p74
      %p77 = scmp.ne.s32.totalorder %s62, %s76
      %p78 = scmp.eq.s32.totalorder %s31, 0
      %p79 = por %p77, %p78
      %s81 = sadd.s32 %s80, 1
      %p84 = scmp.eq.s32.totalorder %s25, 1
      %p85 = scmp.ne.s32.totalorder %s80, %s82
      %p86 = scmp.eq.s32.totalorder %s25, 0
      %p87 = por %p85, %p86
      %p88 = scmp.ne.s32.totalorder %s80, %s82
      %p89 = scmp.eq.s32.totalorder %s30, 1
      %p90 = por %p88, %p89
      %p91 = scmp.ne.s32.totalorder %s82, %s83
      %p92 = scmp.eq.s32.totalorder %s30, 0
      %p93 = por %p91, %p92
      %p94 = scmp.ne.s32.totalorder %s82, %s83
      %p95 = scmp.eq.s32.totalorder %s31, 1
      %p96 = por %p94, %p95
      %p98 = scmp.ne.s32.totalorder %s83, %s97
      %p99 = scmp.eq.s32.totalorder %s31, 0
      %p100 = por %p98, %p99
      %s102 = sadd.s32 %s101, 1
      %p105 = scmp.eq.s32.totalorder %s25, 1
      %p106 = scmp.ne.s32.totalorder %s101, %s103
      %p107 = scmp.eq.s32.totalorder %s25, 0
      %p108 = por %p106, %p107
      %p109 = scmp.ne.s32.totalorder %s101, %s103
      %p110 = scmp.eq.s32.totalorder %s30, 1
      %p111 = por %p109, %p110
      %p112 = scmp.ne.s32.totalorder %s103, %s104
      %p113 = scmp.eq.s32.totalorder %s30, 0
      %p114 = por %p112, %p113
      %p115 = scmp.ne.s32.totalorder %s103, %s104
      %p116 = scmp.eq.s32.totalorder %s31, 1
      %p117 = por %p115, %p116
      %p119 = scmp.ne.s32.totalorder %s104, %s118
      %p120 = scmp.eq.s32.totalorder %s31, 0
      %p121 = por %p119, %p120
      %s123 = sadd.s32 %s122, 1
      %p126 = scmp.eq.s32.totalorder %s25, 1
      %p127 = scmp.ne.s32.totalorder %s122, %s124
      %p128 = scmp.eq.s32.totalorder %s25, 0
      %p129 = por %p127, %p128
      %p130 = scmp.ne.s32.totalorder %s122, %s124
      %p131 = scmp.eq.s32.totalorder %s30, 1
      %p132 = por %p130, %p131
      %p133 = scmp.ne.s32.totalorder %s124, %s125
      %p134 = scmp.eq.s32.totalorder %s30, 0
      %p135 = por %p133, %p134
      %p136 = scmp.ne.s32.totalorder %s124, %s125
      %p137 = scmp.eq.s32.totalorder %s31, 1
      %p138 = por %p136, %p137
      %p140 = scmp.ne.s32.totalorder %s125, %s139
      %p141 = scmp.eq.s32.totalorder %s31, 0
      %p142 = por %p140, %p141
      %s144 = sadd.s32 %s143, 1
      %p147 = scmp.eq.s32.totalorder %s25, 1
      %p148 = scmp.ne.s32.totalorder %s143, %s145
      %p149 = scmp.eq.s32.totalorder %s25, 0
      %p150 = por %p148, %p149
      %p151 = scmp.ne.s32.totalorder %s143, %s145
      %p152 = scmp.eq.s32.totalorder %s30, 1
      %p153 = por %p151, %p152
      %p154 = scmp.ne.s32.totalorder %s145, %s146
      %p155 = scmp.eq.s32.totalorder %s30, 0
      %p156 = por %p154, %p155
      %p157 = scmp.ne.s32.totalorder %s145, %s146
      %p158 = scmp.eq.s32.totalorder %s31, 1
      %p159 = por %p157, %p158
      %p161 = scmp.ne.s32.totalorder %s146, %s160
      %p162 = scmp.eq.s32.totalorder %s31, 0
      %p163 = por %p161, %p162
      %s164 = ssub.s32 %s25, %s32
      %p165 = scmp.eq.s32.totalorder %s164, 0
      %s167 = sadd.s32 %s166, 1
      %s168 = scalar_select %p165, %s166, %s167
      %p171 = pneg %p165
      %p172 = scmp.eq.s32.totalorder %s25, 1
      %p173 = por %p171, %p172
      %p174 = scmp.ne.s32.totalorder %s166, %s169
      %p175 = scmp.eq.s32.totalorder %s25, 0
      %p176 = por %p174, %p175
      %p177 = scmp.ne.s32.totalorder %s166, %s169
      %p178 = scmp.eq.s32.totalorder %s30, 1
      %p179 = por %p177, %p178
      %p180 = scmp.ne.s32.totalorder %s169, %s170
      %p181 = scmp.eq.s32.totalorder %s30, 0
      %p182 = por %p180, %p181
      %p183 = scmp.ne.s32.totalorder %s169, %s170
      %p184 = scmp.eq.s32.totalorder %s31, 1
      %p185 = por %p183, %p184
      %p187 = scmp.ne.s32.totalorder %s170, %s186
      %p188 = scmp.eq.s32.totalorder %s31, 0
      %p189 = por %p187, %p188
      %s190 = ssub.s32 %s25, %s32
      %p191 = scmp.eq.s32.totalorder %s190, 0
      %s193 = sadd.s32 %s192, 1
      %s194 = scalar_select %p191, %s192, %s193
      %p197 = pneg %p191
      %p198 = scmp.eq.s32.totalorder %s25, 1
      %p199 = por %p197, %p198
      %p200 = scmp.ne.s32.totalorder %s192, %s195
      %p201 = scmp.eq.s32.totalorder %s25, 0
      %p202 = por %p200, %p201
      %p203 = scmp.ne.s32.totalorder %s192, %s195
      %p204 = scmp.eq.s32.totalorder %s30, 1
      %p205 = por %p203, %p204
      %p206 = scmp.ne.s32.totalorder %s195, %s196
      %p207 = scmp.eq.s32.totalorder %s30, 0
      %p208 = por %p206, %p207
      %p209 = scmp.ne.s32.totalorder %s195, %s196
      %p210 = scmp.eq.s32.totalorder %s31, 1
      %p211 = por %p209, %p210
      %p213 = scmp.ne.s32.totalorder %s196, %s212
      %p214 = scmp.eq.s32.totalorder %s31, 0
      %p215 = por %p213, %p214
      %s216 = ssub.s32 %s25, %s32
      %p217 = scmp.eq.s32.totalorder %s216, 0
      %s219 = sadd.s32 %s218, 1
      %s220 = scalar_select %p217, %s218, %s219
      %p223 = pneg %p217
      %p224 = scmp.eq.s32.totalorder %s25, 1
      %p225 = por %p223, %p224
      %p226 = scmp.ne.s32.totalorder %s218, %s221
      %p227 = scmp.eq.s32.totalorder %s25, 0
      %p228 = por %p226, %p227
      %p229 = scmp.ne.s32.totalorder %s218, %s221
      %p230 = scmp.eq.s32.totalorder %s30, 1
      %p231 = por %p229, %p230
      %p232 = scmp.ne.s32.totalorder %s221, %s222
      %p233 = scmp.eq.s32.totalorder %s30, 0
      %p234 = por %p232, %p233
      %p235 = scmp.ne.s32.totalorder %s221, %s222
      %p236 = scmp.eq.s32.totalorder %s31, 1
      %p237 = por %p235, %p236
      %p239 = scmp.ne.s32.totalorder %s222, %s238
      %p240 = scmp.eq.s32.totalorder %s31, 0
      %p241 = por %p239, %p240
      %p242 = scmp.le.s32.totalorder 1, %s25
      %p243 = scmp.lt.s32.totalorder %s25, 3
      %p244 = pnand %p242, %p243
      %p245 = pneg %p244
      // Predicated region
      $region9: #{tpu_custom_call.1} parent=5 // pred_check
        _
      $region10: #{tpu_custom_call.1} parent=5 // pred_check_branch
        %247 = sbr.rel (%p244) target = $region12
      $region11: #{tpu_custom_call.1} parent=5 // pred_region
        %s248 = ssub.s32 %s25, 1
        // Predicated region
        $region13: #{tpu_custom_call.1} parent=11 // pred_check
          %p249 = pneg %p72
        $region14: #{tpu_custom_call.1} parent=11 // pred_check_branch
          %251 = sbr.rel (%p249) target = $region16
        $region15: #{tpu_custom_call.1} parent=11 // pred_region
          %s253 = ssub.s32 6144, 6144
          %254 = vsyncadd [#allocation6], %s253
          %s255 = sshll.u32 [#allocation5], 4
          %s256 = int_to_ptr.vmem [resolvable:$true] %s255
          %261 = dma.hbm_to_vmem [thread:$0]  %s1, 6144, %s256, [#allocation6], 384, 384, 24
        $region16: #{tpu_custom_call.1} parent=11 // pred_fallthru
          _
        // Predicated region
        $region17: #{tpu_custom_call.1} parent=11 // pred_check
          %p262 = pneg %p93
        $region18: #{tpu_custom_call.1} parent=11 // pred_check_branch
          %264 = sbr.rel (%p262) target = $region20
        $region19: #{tpu_custom_call.1} parent=11 // pred_region
          _
        $region20: #{tpu_custom_call.1} parent=11 // pred_fallthru
          _
        // Predicated region
        $region21: #{tpu_custom_call.1} parent=11 // pred_check
          %p265 = pneg %p114
        $region22: #{tpu_custom_call.1} parent=11 // pred_check_branch
          %267 = sbr.rel (%p265) target = $region24
        $region23: #{tpu_custom_call.1} parent=11 // pred_region
          _
        $region24: #{tpu_custom_call.1} parent=11 // pred_fallthru
          _
        // Predicated region
        $region25: #{tpu_custom_call.1} parent=11 // pred_check
          %p268 = pneg %p135
        $region26: #{tpu_custom_call.1} parent=11 // pred_check_branch
          %270 = sbr.rel (%p268) target = $region28
        $region27: #{tpu_custom_call.1} parent=11 // pred_region
          _
        $region28: #{tpu_custom_call.1} parent=11 // pred_fallthru
          _
        // Predicated region
        $region29: #{tpu_custom_call.1} parent=11 // pred_check
          %p271 = pneg %p156
        $region30: #{tpu_custom_call.1} parent=11 // pred_check_branch
          %273 = sbr.rel (%p271) target = $region32
        $region31: #{tpu_custom_call.1} parent=11 // pred_region
          _
        $region32: #{tpu_custom_call.1} parent=11 // pred_fallthru
          _
      $region12: #{tpu_custom_call.1} parent=5 // pred_fallthru
        _
      %p274 = scmp.lt.s32.totalorder %s25, 2
      // Predicated region
      $region33: #{tpu_custom_call.1} parent=5 // pred_check
        %p275 = pneg %p274
      $region34: #{tpu_custom_call.1} parent=5 // pred_check_branch
        %277 = sbr.rel (%p275) target = $region36
      $region35: #{tpu_custom_call.1} parent=5 // pred_region
        // Predicated region
        $region37: #{tpu_custom_call.1} parent=35 // pred_check
          %p278 = pneg %p45
        $region38: #{tpu_custom_call.1} parent=35 // pred_check_branch
          %280 = sbr.rel (%p278) target = $region40
        $region39: #{tpu_custom_call.1} parent=35 // pred_region
          %s281 = sand.u32 %s35, 1
          %s282 = scalar_lea.sflag [#allocation3], %s281
          %s283 = sand.u32 %s35, 1
          %s284 = smul.addr %s283, 8
          %s285 = scalar_lea.vmem [#allocation2], %s284
          %s287 = ssub.s32 128, 128
          %288 = vsyncadd %s282, %s287
          %s289 = smul.addr %s25, 128
          %s290 = scalar_lea.hbm %s0, %s289
          %s292 = sshll.u32 %s285, 4
          %s293 = int_to_ptr.vmem [resolvable:$true] %s292
          %295 = dma.hbm_to_vmem [thread:$0]  %s290, 128, %s293, %s282
        $region40: #{tpu_custom_call.1} parent=35 // pred_fallthru
          _
      $region36: #{tpu_custom_call.1} parent=5 // pred_fallthru
        _
      %p296 = scmp.le.s32.totalorder 1, %s25
      %p297 = scmp.lt.s32.totalorder %s25, 3
      %p298 = pnand %p296, %p297
      %p299 = pneg %p298
      // Predicated region
      $region41: #{tpu_custom_call.1} parent=5 // pred_check
        _
      $region42: #{tpu_custom_call.1} parent=5 // pred_check_branch
        %301 = sbr.rel (%p298) target = $region44
      $region43: #{tpu_custom_call.1} parent=5 // pred_region
        %s302 = ssub.s32 %s25, 1
        %s303 = sand.u32 %s38, 1
        %s304 = scalar_lea.sflag [#allocation3], %s303
        %s305 = sand.u32 %s38, 1
        %s306 = smul.addr %s305, 8
        %s307 = scalar_lea.vmem [#allocation2], %s306
        // Predicated region
        $region45: #{tpu_custom_call.1} parent=43 // pred_check
          %p308 = pneg %p51
        $region46: #{tpu_custom_call.1} parent=43 // pred_check_branch
          %310 = sbr.rel (%p308) target = $region48
        $region47: #{tpu_custom_call.1} parent=43 // pred_region
          %311 = dma.done %s304, 128
        $region48: #{tpu_custom_call.1} parent=43 // pred_fallthru
          _
        // Predicated region
        $region49: #{tpu_custom_call.1} parent=43 // pred_check
          %p312 = pneg %p72
        $region50: #{tpu_custom_call.1} parent=43 // pred_check_branch
          %314 = sbr.rel (%p312) target = $region52
        $region51: #{tpu_custom_call.1} parent=43 // pred_region
          %315 = dma.done [#allocation6], 6144
        $region52: #{tpu_custom_call.1} parent=43 // pred_fallthru
          _
        %s316 = sand.u32 %s38, 1
        %s317 = scalar_lea.sflag [#allocation3], %s316
        %s318 = sand.u32 %s38, 1
        %s319 = smul.addr %s318, 8
        %s320 = scalar_lea.vmem [#allocation2], %s319
        %p321 = pneg %p51
        %p322 = pneg %p48
        %p323 = pneg %p72
        %p324 = pneg %p69
        %p325 = pneg %p93
        %p326 = pneg %p90
        %p327 = pneg %p114
        %p328 = pneg %p111
        %p329 = pneg %p135
        %p330 = pneg %p132
        %p331 = pneg %p156
        %p332 = pneg %p153
        %p333 = pneg %p182
        %p334 = pneg %p179
        %s335 = sand.u32 %s169, 1
        %s336 = scalar_lea.sflag [#allocation4], %s335
        %s337 = sand.u32 %s169, 1
        %s338 = smul.addr %s337, 8
        %s339 = scalar_lea.vmem [#allocation7], %s338
        %p340 = pneg %p208
        %p341 = pneg %p205
        %s342 = sand.u32 %s195, 1
        %s343 = scalar_lea.sflag [#allocation9], %s342
        %s344 = sand.u32 %s195, 1
        %s345 = smul.addr %s344, 24
        %s346 = scalar_lea.vmem [#allocation8], %s345
        %p347 = pneg %p234
        %p348 = pneg %p231
        %p349 = scmp.lt.s32.totalorder %s30, 1
        %s350 = scalar_select %p349, %s30, 1
        %s351 = smul.addr %s350, 8
        %s352 = scalar_lea.vmem %s8, %s351
        %p353 = scmp.lt.s32.totalorder %s30, 1
        %s354 = scalar_select %p353, %s30, 1
        %s355 = smul.addr %s354, 8
        %s356 = scalar_lea.vmem %s8, %s355
        %v357 = vlaneseq
        %v358 = vand.u32 %v357, 127
        %v359 = vld [vmem:[%s307] sm:$0xff]
        %v360 = vld [vmem:[#allocation5] sm:$0xff]
        %v361 = vld [vmem:[#allocation5 + $0x8] sm:$0xff]
        %v362 = vld [vmem:[#allocation5 + $0x10] sm:$0xff]
        %v363 = vld [vmem:[#allocation5 + $0x18] sm:$0xff]
        %v364 = vld [vmem:[#allocation5 + $0x20] sm:$0xff]
        %v365 = vld [vmem:[#allocation5 + $0x28] sm:$0xff]
        %v366 = vld [vmem:[#allocation5 + $0x30] sm:$0xff]
        %v367 = vld [vmem:[#allocation5 + $0x38] sm:$0xff]
        %v368 = vld [vmem:[#allocation5 + $0x40] sm:$0xff]
        %v369 = vld [vmem:[#allocation5 + $0x48] sm:$0xff]
        %v370 = vld [vmem:[#allocation5 + $0x50] sm:$0xff]
        %v371 = vld [vmem:[#allocation5 + $0x58] sm:$0xff]
        %v372 = vld [vmem:[#allocation5 + $0x60] sm:$0xff]
        %v373 = vld [vmem:[#allocation5 + $0x68] sm:$0xff]
        %v374 = vld [vmem:[#allocation5 + $0x70] sm:$0xff]
        %v375 = vld [vmem:[#allocation5 + $0x78] sm:$0xff]
        %v376 = vld [vmem:[#allocation5 + $0x80] sm:$0xff]
        %v377 = vld [vmem:[#allocation5 + $0x88] sm:$0xff]
        %v378 = vld [vmem:[#allocation5 + $0x90] sm:$0xff]
        %v379 = vld [vmem:[#allocation5 + $0x98] sm:$0xff]
        %v380 = vld [vmem:[#allocation5 + $0xa0] sm:$0xff]
        %v381 = vld [vmem:[#allocation5 + $0xa8] sm:$0xff]
        %v382 = vld [vmem:[#allocation5 + $0xb0] sm:$0xff]
        %v383 = vld [vmem:[#allocation5 + $0xb8] sm:$0xff]
        %v384 = vld [vmem:[#allocation5 + $0xc0] sm:$0xff]
        %v385 = vld [vmem:[#allocation5 + $0xc8] sm:$0xff]
        %v386 = vld [vmem:[#allocation5 + $0xd0] sm:$0xff]
        %v387 = vld [vmem:[#allocation5 + $0xd8] sm:$0xff]
        %v388 = vld [vmem:[#allocation5 + $0xe0] sm:$0xff]
        %v389 = vld [vmem:[#allocation5 + $0xe8] sm:$0xff]
        %v390 = vld [vmem:[#allocation5 + $0xf0] sm:$0xff]
        %v391 = vld [vmem:[#allocation5 + $0xf8] sm:$0xff]
        %v392 = vld [vmem:[#allocation5 + $0x100] sm:$0xff]
        %v393 = vld [vmem:[#allocation5 + $0x108] sm:$0xff]
        %v394 = vld [vmem:[#allocation5 + $0x110] sm:$0xff]
        %v395 = vld [vmem:[#allocation5 + $0x118] sm:$0xff]
        %v396 = vld [vmem:[#allocation5 + $0x120] sm:$0xff]
        %v397 = vld [vmem:[#allocation5 + $0x128] sm:$0xff]
        %v398 = vld [vmem:[#allocation5 + $0x130] sm:$0xff]
        %v399 = vld [vmem:[#allocation5 + $0x138] sm:$0xff]
        %v400 = vld [vmem:[#allocation5 + $0x140] sm:$0xff]
        %v401 = vld [vmem:[#allocation5 + $0x148] sm:$0xff]
        %v402 = vld [vmem:[#allocation5 + $0x150] sm:$0xff]
        %v403 = vld [vmem:[#allocation5 + $0x158] sm:$0xff]
        %v404 = vld [vmem:[#allocation5 + $0x160] sm:$0xff]
        %v405 = vld [vmem:[#allocation5 + $0x168] sm:$0xff]
        %v406 = vld [vmem:[#allocation5 + $0x170] sm:$0xff]
        %v407 = vld [vmem:[#allocation5 + $0x178] sm:$0xff]
        %v408 = vld [vmem:[%s2] sm:$0x7]
        %v409 = vld [vmem:[%s3] sm:$0x7]
        %v410 = vld [vmem:[%s4] sm:$0x7]
        %v411 = vld [vmem:[%s5] sm:$0x7]
        %v412 = vlaneseq
        %v413 = vshrl.u32 %v412, 7
        %v414 = vsub.s32 0, %v413
        %v415 = vrot.slane %v409, %v414
        %v416 = vmul.f32 %v359, %v415
        %417 = vmin.xlane.f32.xlu0 %v416
        %v418 = vpop.xlane.xlu0 %417
        %vm419 = vcmp.eq.f32.partialorder %v416, %v418
        %v420 = vsel %vm419, %v358, 128
        %v421 = vand.u32 %v420, 65535
        %v422 = vshra.s32 %v420, 16
        %v423 = vcvt.s32.f32 %v421
        %v424 = vcvt.s32.f32 %v422
        %425 = vmin.xlane.f32.xlu0 %v424
        %v426 = vpop.xlane.xlu0 %425
        %vm427 = vcmp.eq.f32.partialorder %v424, %v426
        %v428 = vsel %vm427, %v423, inf
        %429 = vmin.xlane.f32.xlu0 %v428
        %v430 = vpop.xlane.xlu0 %429
        %v431 = vcvt.f32.s32 %v430
        %v432 = vcvt.f32.s32 %v426
        %v433 = vshll.u32 %v432, 16
        %v434 = vadd.s32 %v433, %v431
        %vm435 = vcmp.eq.s32.totalorder %v358, %v434
        %v436 = vsel %vm435, 1, 0
        %v437 = vcvt.s32.f32 %v436
        %438 = vmatprep.subr.mxu0 %v361
        %439 = vmatpush1.msra.mxu0 %v360
        %440 = vmatprep.subr.mxu0 %v364
        %441 = vmatpush1.msra.mxu0 %v363
        %442 = vmatprep.subr.mxu0 %v367
        %443 = vmatpush1.msra.mxu0 %v366
        %444 = vmatprep.subr.mxu0 %v370
        %445 = vmatpush1.msra.mxu0 %v369
        %446 = vmatprep.subr.mxu0 %v373
        %447 = vmatpush1.msra.mxu0 %v372
        %448 = vmatprep.subr.mxu0 %v376
        %449 = vmatpush1.msra.mxu0 %v375
        %450 = vmatprep.subr.mxu0 %v379
        %451 = vmatpush1.msra.mxu0 %v378
        %452 = vmatprep.subr.mxu0 %v382
        %453 = vmatpush1.msra.mxu0 %v381
        %454 = vmatprep.subr.mxu0 %v385
        %455 = vmatpush1.msra.mxu0 %v384
        %456 = vmatprep.subr.mxu0 %v388
        %457 = vmatpush1.msra.mxu0 %v387
        %458 = vmatprep.subr.mxu0 %v391
        %459 = vmatpush1.msra.mxu0 %v390
        %460 = vmatprep.subr.mxu0 %v394
        %461 = vmatpush1.msra.mxu0 %v393
        %462 = vmatprep.subr.mxu0 %v397
        %463 = vmatpush1.msra.mxu0 %v396
        %464 = vmatprep.subr.mxu0 %v400
        %465 = vmatpush1.msra.mxu0 %v399
        %466 = vmatprep.subr.mxu0 %v403
        %467 = vmatpush1.msra.mxu0 %v402
        %468 = vmatprep.subr.mxu0 %v406
        %469 = vmatpush1.msra.mxu0 %v405
        %470 = vmatprep.subr.mxu0 0.0
        %471 = vmatpush1.msra.mxu0 0.0
        %472 = vmatprep.subr.mxu0 0.0
        %473 = vmatpush1.msra.mxu0 0.0
        %474 = vmatprep.subr.mxu0 0.0
        %475 = vmatpush1.msra.mxu0 0.0
        %476 = vmatprep.subr.mxu0 0.0
        %477 = vmatpush1.msra.mxu0 0.0
        %478 = vmatprep.subr.mxu0 0.0
        %479 = vmatpush1.msra.mxu0 0.0
        %480 = vmatprep.subr.mxu0 0.0
        %481 = vmatpush1.msra.mxu0 0.0
        %482 = vmatprep.subr.mxu0 0.0
        %483 = vmatpush1.msra.mxu0 0.0
        %484 = vmatprep.subr.mxu0 0.0
        %485 = vmatpush1.msra.mxu0 0.0
        %486 = vmatprep.subr.mxu0 0.0
        %487 = vmatpush1.msra.mxu0 0.0
        %488 = vmatprep.subr.mxu0 0.0
        %489 = vmatpush1.msra.mxu0 0.0
        %490 = vmatprep.subr.mxu0 0.0
        %491 = vmatpush1.msra.mxu0 0.0
        %492 = vmatprep.subr.mxu0 0.0
        %493 = vmatpush1.msra.mxu0 0.0
        %494 = vmatprep.subr.mxu0 0.0
        %495 = vmatpush1.msra.mxu0 0.0
        %496 = vmatprep.subr.mxu0 0.0
        %497 = vmatpush1.msra.mxu0 0.0
        %498 = vmatprep.subr.mxu0 0.0
        %499 = vmatpush1.msra.mxu0 0.0
        %500 = vmatprep.subr.mxu0 0.0
        %501 = vmatpush1.msra.mxu0 0.0
        %502 = vmatprep.mubr.f32.mxu0 0.0
        %503 = vmatmul.mubr.f32.gmra.mrb[0].mxu0 %v437
        %v504 = vpop.f32.mrb[0].mxu0
        %v505 = vadd.f32 0.0, %v504
        %v506 = vpop.f32.mrb[0].mxu0
        %v507 = vadd.f32 0.0, %v506
        %508 = vdwg.mxu0
        %509 = vmatprep.subr.mxu0 0.0
        %510 = vmatpush1.msra.mxu0 %v362
        %511 = vmatprep.subr.mxu0 0.0
        %512 = vmatpush1.msra.mxu0 %v365
        %513 = vmatprep.subr.mxu0 0.0
        %514 = vmatpush1.msra.mxu0 %v368
        %515 = vmatprep.subr.mxu0 0.0
        %516 = vmatpush1.msra.mxu0 %v371
        %517 = vmatprep.subr.mxu0 0.0
        %518 = vmatpush1.msra.mxu0 %v374
        %519 = vmatprep.subr.mxu0 0.0
        %520 = vmatpush1.msra.mxu0 %v377
        %521 = vmatprep.subr.mxu0 0.0
        %522 = vmatpush1.msra.mxu0 %v380
        %523 = vmatprep.subr.mxu0 0.0
        %524 = vmatpush1.msra.mxu0 %v383
        %525 = vmatprep.subr.mxu0 0.0
        %526 = vmatpush1.msra.mxu0 %v386
        %527 = vmatprep.subr.mxu0 0.0
        %528 = vmatpush1.msra.mxu0 %v389
        %529 = vmatprep.subr.mxu0 0.0
        %530 = vmatpush1.msra.mxu0 %v392
        %531 = vmatprep.subr.mxu0 0.0
        %532 = vmatpush1.msra.mxu0 %v395
        %533 = vmatprep.subr.mxu0 0.0
        %534 = vmatpush1.msra.mxu0 %v398
        %535 = vmatprep.subr.mxu0 0.0
        %536 = vmatpush1.msra.mxu0 %v401
        %537 = vmatprep.subr.mxu0 0.0
        %538 = vmatpush1.msra.mxu0 %v404
        %539 = vmatprep.subr.mxu0 0.0
        %540 = vmatpush1.msra.mxu0 %v407
        %541 = vmatprep.subr.mxu0 0.0
        %542 = vmatpush1.msra.mxu0 0.0
        %543 = vmatprep.subr.mxu0 0.0
        %544 = vmatpush1.msra.mxu0 0.0
        %545 = vmatprep.subr.mxu0 0.0
        %546 = vmatpush1.msra.mxu0 0.0
        %547 = vmatprep.subr.mxu0 0.0
        %548 = vmatpush1.msra.mxu0 0.0
        %549 = vmatprep.subr.mxu0 0.0
        %550 = vmatpush1.msra.mxu0 0.0
        %551 = vmatprep.subr.mxu0 0.0
        %552 = vmatpush1.msra.mxu0 0.0
        %553 = vmatprep.subr.mxu0 0.0
        %554 = vmatpush1.msra.mxu0 0.0
        %555 = vmatprep.subr.mxu0 0.0
        %556 = vmatpush1.msra.mxu0 0.0
        %557 = vmatprep.subr.mxu0 0.0
        %558 = vmatpush1.msra.mxu0 0.0
        %559 = vmatprep.subr.mxu0 0.0
        %560 = vmatpush1.msra.mxu0 0.0
        %561 = vmatprep.subr.mxu0 0.0
        %562 = vmatpush1.msra.mxu0 0.0
        %563 = vmatprep.subr.mxu0 0.0
        %564 = vmatpush1.msra.mxu0 0.0
        %565 = vmatprep.subr.mxu0 0.0
        %566 = vmatpush1.msra.mxu0 0.0
        %567 = vmatprep.subr.mxu0 0.0
        %568 = vmatpush1.msra.mxu0 0.0
        %569 = vmatprep.subr.mxu0 0.0
        %570 = vmatpush1.msra.mxu0 0.0
        %571 = vmatprep.subr.mxu0 0.0
        %572 = vmatpush1.msra.mxu0 0.0
        %573 = vmatprep.mubr.f32.mxu0 0.0
        %574 = vmatmul.mubr.f32.gmra.mrb[0].mxu0 %v437
        %v575 = vpop.f32.mrb[0].mxu0
        %v576 = vadd.f32 0.0, %v575
        %v577 = vpop.f32.mrb[0].mxu0
        %578 = vdwg.mxu0
        %v579 = vlaneseq
        %v580 = vshrl.u32 %v579, 7
        %v581 = vsub.s32 0, %v580
        %v582 = vrot.slane %v410, %v581
        %v583 = vadd.f32 %v582, 0.0
        %v584 = vlaneseq
        %v585 = vshrl.u32 %v584, 7
        %v586 = vsub.s32 0, %v585
        %v587 = vrot.slane %v411, %v586
        %v588 = vadd.f32 %v587, 0.0
        %589 = vst [vmem:[%s346] sm:$0xff] %v583
        %v590 = vlaneseq
        %v591 = vshrl.u32 %v590, 7
        %v592 = vsub.s32 0, %v591
        %v593 = vrot.slane %v408, %v592
        %v594 = vmul.f32 %v418, %v593
        %v595 = vsub.f32 %v359, %v594
        %v596 = vsel %vm435, %v418, %v595
        %v597 = vsub.f32 %v583, %v505
        %v598 = vsub.f32 %v588, %v507
        %v599 = vlaneseq
        %v600 = vshrl.u32 %v599, 7
        %v601 = vsub.s32 1, %v600
        %v602 = vrot.slane %v409, %v601
        %v603 = vmul.f32 %v596, %v602
        %604 = vmin.xlane.f32.xlu0 %v603
        %v605 = vpop.xlane.xlu0 %604
        %vm606 = vcmp.eq.f32.partialorder %v603, %v605
        %v607 = vsel %vm606, %v358, 128
        %v608 = vand.u32 %v607, 65535
        %v609 = vshra.s32 %v607, 16
        %v610 = vcvt.s32.f32 %v608
        %v611 = vcvt.s32.f32 %v609
        %612 = vmin.xlane.f32.xlu0 %v611
        %v613 = vpop.xlane.xlu0 %612
        %vm614 = vcmp.eq.f32.partialorder %v611, %v613
        %v615 = vsel %vm614, %v610, inf
        %616 = vmin.xlane.f32.xlu0 %v615
        %v617 = vpop.xlane.xlu0 %616
        %v618 = vcvt.f32.s32 %v617
        %v619 = vcvt.f32.s32 %v613
        %v620 = vshll.u32 %v619, 16
        %v621 = vadd.s32 %v620, %v618
        %vm622 = vcmp.eq.s32.totalorder %v358, %v621
        %v623 = vsel %vm622, 1, 0
        %v624 = vcvt.s32.f32 %v623
        %625 = vmatprep.subr.mxu0 %v361
        %626 = vmatpush1.msra.mxu0 %v360
        %627 = vmatprep.subr.mxu0 %v364
        %628 = vmatpush1.msra.mxu0 %v363
        %629 = vmatprep.subr.mxu0 %v367
        %630 = vmatpush1.msra.mxu0 %v366
        %631 = vmatprep.subr.mxu0 %v370
        %632 = vmatpush1.msra.mxu0 %v369
        %633 = vmatprep.subr.mxu0 %v373
        %634 = vmatpush1.msra.mxu0 %v372
        %635 = vmatprep.subr.mxu0 %v376
        %636 = vmatpush1.msra.mxu0 %v375
        %637 = vmatprep.subr.mxu0 %v379
        %638 = vmatpush1.msra.mxu0 %v378
        %639 = vmatprep.subr.mxu0 %v382
        %640 = vmatpush1.msra.mxu0 %v381
        %641 = vmatprep.subr.mxu0 %v385
        %642 = vmatpush1.msra.mxu0 %v384
        %643 = vmatprep.subr.mxu0 %v388
        %644 = vmatpush1.msra.mxu0 %v387
        %645 = vmatprep.subr.mxu0 %v391
        %646 = vmatpush1.msra.mxu0 %v390
        %647 = vmatprep.subr.mxu0 %v394
        %648 = vmatpush1.msra.mxu0 %v393
        %649 = vmatprep.subr.mxu0 %v397
        %650 = vmatpush1.msra.mxu0 %v396
        %651 = vmatprep.subr.mxu0 %v400
        %652 = vmatpush1.msra.mxu0 %v399
        %653 = vmatprep.subr.mxu0 %v403
        %654 = vmatpush1.msra.mxu0 %v402
        %655 = vmatprep.subr.mxu0 %v406
        %656 = vmatpush1.msra.mxu0 %v405
        %657 = vmatprep.subr.mxu0 0.0
        %658 = vmatpush1.msra.mxu0 0.0
        %659 = vmatprep.subr.mxu0 0.0
        %660 = vmatpush1.msra.mxu0 0.0
        %661 = vmatprep.subr.mxu0 0.0
        %662 = vmatpush1.msra.mxu0 0.0
        %663 = vmatprep.subr.mxu0 0.0
        %664 = vmatpush1.msra.mxu0 0.0
        %665 = vmatprep.subr.mxu0 0.0
        %666 = vmatpush1.msra.mxu0 0.0
        %667 = vmatprep.subr.mxu0 0.0
        %668 = vmatpush1.msra.mxu0 0.0
        %669 = vmatprep.subr.mxu0 0.0
        %670 = vmatpush1.msra.mxu0 0.0
        %671 = vmatprep.subr.mxu0 0.0
        %672 = vmatpush1.msra.mxu0 0.0
        %673 = vmatprep.subr.mxu0 0.0
        %674 = vmatpush1.msra.mxu0 0.0
        %675 = vmatprep.subr.mxu0 0.0
        %676 = vmatpush1.msra.mxu0 0.0
        %677 = vmatprep.subr.mxu0 0.0
        %678 = vmatpush1.msra.mxu0 0.0
        %679 = vmatprep.subr.mxu0 0.0
        %680 = vmatpush1.msra.mxu0 0.0
        %681 = vmatprep.subr.mxu0 0.0
        %682 = vmatpush1.msra.mxu0 0.0
        %683 = vmatprep.subr.mxu0 0.0
        %684 = vmatpush1.msra.mxu0 0.0
        %685 = vmatprep.subr.mxu0 0.0
        %686 = vmatpush1.msra.mxu0 0.0
        %687 = vmatprep.subr.mxu0 0.0
        %688 = vmatpush1.msra.mxu0 0.0
        %689 = vmatprep.mubr.f32.mxu0 0.0
        %690 = vmatmul.mubr.f32.gmra.mrb[0].mxu0 %v624
        %v691 = vpop.f32.mrb[0].mxu0
        %v692 = vadd.f32 0.0, %v691
        %v693 = vpop.f32.mrb[0].mxu0
        %v694 = vadd.f32 0.0, %v693
        %695 = vdwg.mxu0
        %696 = vmatprep.subr.mxu0 0.0
        %697 = vmatpush1.msra.mxu0 %v362
        %698 = vmatprep.subr.mxu0 0.0
        %699 = vmatpush1.msra.mxu0 %v365
        %700 = vmatprep.subr.mxu0 0.0
        %701 = vmatpush1.msra.mxu0 %v368
        %702 = vmatprep.subr.mxu0 0.0
        %703 = vmatpush1.msra.mxu0 %v371
        %704 = vmatprep.subr.mxu0 0.0
        %705 = vmatpush1.msra.mxu0 %v374
        %706 = vmatprep.subr.mxu0 0.0
        %707 = vmatpush1.msra.mxu0 %v377
        %708 = vmatprep.subr.mxu0 0.0
        %709 = vmatpush1.msra.mxu0 %v380
        %710 = vmatprep.subr.mxu0 0.0
        %711 = vmatpush1.msra.mxu0 %v383
        %712 = vmatprep.subr.mxu0 0.0
        %713 = vmatpush1.msra.mxu0 %v386
        %714 = vmatprep.subr.mxu0 0.0
        %715 = vmatpush1.msra.mxu0 %v389
        %716 = vmatprep.subr.mxu0 0.0
        %717 = vmatpush1.msra.mxu0 %v392
        %718 = vmatprep.subr.mxu0 0.0
        %719 = vmatpush1.msra.mxu0 %v395
        %720 = vmatprep.subr.mxu0 0.0
        %721 = vmatpush1.msra.mxu0 %v398
        %722 = vmatprep.subr.mxu0 0.0
        %723 = vmatpush1.msra.mxu0 %v401
        %724 = vmatprep.subr.mxu0 0.0
        %725 = vmatpush1.msra.mxu0 %v404
        %726 = vmatprep.subr.mxu0 0.0
        %727 = vmatpush1.msra.mxu0 %v407
        %728 = vmatprep.subr.mxu0 0.0
        %729 = vmatpush1.msra.mxu0 0.0
        %730 = vmatprep.subr.mxu0 0.0
        %731 = vmatpush1.msra.mxu0 0.0
        %732 = vmatprep.subr.mxu0 0.0
        %733 = vmatpush1.msra.mxu0 0.0
        %734 = vmatprep.subr.mxu0 0.0
        %735 = vmatpush1.msra.mxu0 0.0
        %736 = vmatprep.subr.mxu0 0.0
        %737 = vmatpush1.msra.mxu0 0.0
        %738 = vmatprep.subr.mxu0 0.0
        %739 = vmatpush1.msra.mxu0 0.0
        %740 = vmatprep.subr.mxu0 0.0
        %741 = vmatpush1.msra.mxu0 0.0
        %742 = vmatprep.subr.mxu0 0.0
        %743 = vmatpush1.msra.mxu0 0.0
        %744 = vmatprep.subr.mxu0 0.0
        %745 = vmatpush1.msra.mxu0 0.0
        %746 = vmatprep.subr.mxu0 0.0
        %747 = vmatpush1.msra.mxu0 0.0
        %748 = vmatprep.subr.mxu0 0.0
        %749 = vmatpush1.msra.mxu0 0.0
        %750 = vmatprep.subr.mxu0 0.0
        %751 = vmatpush1.msra.mxu0 0.0
        %752 = vmatprep.subr.mxu0 0.0
        %753 = vmatpush1.msra.mxu0 0.0
        %754 = vmatprep.subr.mxu0 0.0
        %755 = vmatpush1.msra.mxu0 0.0
        %756 = vmatprep.subr.mxu0 0.0
        %757 = vmatpush1.msra.mxu0 0.0
        %758 = vmatprep.subr.mxu0 0.0
        %759 = vmatpush1.msra.mxu0 0.0
        %760 = vmatprep.mubr.f32.mxu0 0.0
        %761 = vmatmul.mubr.f32.gmra.mrb[0].mxu0 %v624
        %v762 = vpop.f32.mrb[0].mxu0
        %v763 = vadd.f32 0.0, %v762
        %v764 = vpop.f32.mrb[0].mxu0
        %765 = vdwg.mxu0
        %vm766 = vcmp.eq.s32.totalorder %v434, %v621
        %v767 = vsel %vm766, 1, 0
        %v768 = vcvt.s32.f32 %v767
        %770 = vset.pattern.permute.xlu0 1
        %771 = vperm.xlu0 %770, %v576
        %v772 = vpop.permute.xlu0 %771
        %v774 = vmul.f32 %v772, %v597
        %v775 = vadd.f32 %v774, 0.0
        %v776 = vmul.f32 %v772, %v598
        %v777 = vadd.f32 %v776, 0.0
        %v778 = vmul.f32 %v768, %v597
        %v779 = vadd.f32 %v692, %v778
        %v780 = vmul.f32 %v768, %v598
        %v781 = vadd.f32 %v694, %v780
        %v782 = vlaneseq
        %v783 = vshrl.u32 %v782, 7
        %v784 = vsub.s32 1, %v783
        %v785 = vrot.slane %v410, %v784
        %v786 = vadd.f32 %v785, %v775
        %v787 = vlaneseq
        %v788 = vshrl.u32 %v787, 7
        %v789 = vsub.s32 1, %v788
        %v790 = vrot.slane %v411, %v789
        %v791 = vadd.f32 %v790, %v777
        %s792 = scalar_lea.vmem %s346, 8 [#allocation8]
        %793 = vst [vmem:[%s792] sm:$0xff] %v786
        %v794 = vlaneseq
        %v795 = vshrl.u32 %v794, 7
        %v796 = vsub.s32 1, %v795
        %v797 = vrot.slane %v408, %v796
        %v798 = vmul.f32 %v605, %v797
        %v799 = vsub.f32 %v596, %v798
        %v800 = vsel %vm622, %v605, %v799
        %v801 = vmul.f32 %v605, %v576
        %v802 = vsub.f32 %v418, %v801
        %v803 = vsel %vm766, %v605, %v802
        %v804 = vsub.f32 %v786, %v779
        %v805 = vsub.f32 %v791, %v781
        %v806 = vlaneseq
        %v807 = vshrl.u32 %v806, 7
        %v808 = vsub.s32 2, %v807
        %v809 = vrot.slane %v409, %v808
        %v810 = vmul.f32 %v800, %v809
        %811 = vmin.xlane.f32.xlu0 %v810
        %v812 = vpop.xlane.xlu0 %811
        %vm813 = vcmp.eq.f32.partialorder %v810, %v812
        %v814 = vsel %vm813, %v358, 128
        %v815 = vand.u32 %v814, 65535
        %v816 = vshra.s32 %v814, 16
        %v817 = vcvt.s32.f32 %v815
        %v818 = vcvt.s32.f32 %v816
        %819 = vmin.xlane.f32.xlu0 %v818
        %v820 = vpop.xlane.xlu0 %819
        %vm821 = vcmp.eq.f32.partialorder %v818, %v820
        %v822 = vsel %vm821, %v817, inf
        %823 = vmin.xlane.f32.xlu0 %v822
        %v824 = vpop.xlane.xlu0 %823
        %v825 = vcvt.f32.s32 %v824
        %v826 = vcvt.f32.s32 %v820
        %v827 = vshll.u32 %v826, 16
        %v828 = vadd.s32 %v827, %v825
        %vm829 = vcmp.eq.s32.totalorder %v358, %v828
        %v830 = vsel %vm829, 1, 0
        %v831 = vcvt.s32.f32 %v830
        %832 = vmatprep.subr.mxu0 %v361
        %833 = vmatpush1.msra.mxu0 %v360
        %834 = vmatprep.subr.mxu0 %v364
        %835 = vmatpush1.msra.mxu0 %v363
        %836 = vmatprep.subr.mxu0 %v367
        %837 = vmatpush1.msra.mxu0 %v366
        %838 = vmatprep.subr.mxu0 %v370
        %839 = vmatpush1.msra.mxu0 %v369
        %840 = vmatprep.subr.mxu0 %v373
        %841 = vmatpush1.msra.mxu0 %v372
        %842 = vmatprep.subr.mxu0 %v376
        %843 = vmatpush1.msra.mxu0 %v375
        %844 = vmatprep.subr.mxu0 %v379
        %845 = vmatpush1.msra.mxu0 %v378
        %846 = vmatprep.subr.mxu0 %v382
        %847 = vmatpush1.msra.mxu0 %v381
        %848 = vmatprep.subr.mxu0 %v385
        %849 = vmatpush1.msra.mxu0 %v384
        %850 = vmatprep.subr.mxu0 %v388
        %851 = vmatpush1.msra.mxu0 %v387
        %852 = vmatprep.subr.mxu0 %v391
        %853 = vmatpush1.msra.mxu0 %v390
        %854 = vmatprep.subr.mxu0 %v394
        %855 = vmatpush1.msra.mxu0 %v393
        %856 = vmatprep.subr.mxu0 %v397
        %857 = vmatpush1.msra.mxu0 %v396
        %858 = vmatprep.subr.mxu0 %v400
        %859 = vmatpush1.msra.mxu0 %v399
        %860 = vmatprep.subr.mxu0 %v403
        %861 = vmatpush1.msra.mxu0 %v402
        %862 = vmatprep.subr.mxu0 %v406
        %863 = vmatpush1.msra.mxu0 %v405
        %864 = vmatprep.subr.mxu0 0.0
        %865 = vmatpush1.msra.mxu0 0.0
        %866 = vmatprep.subr.mxu0 0.0
        %867 = vmatpush1.msra.mxu0 0.0
        %868 = vmatprep.subr.mxu0 0.0
        %869 = vmatpush1.msra.mxu0 0.0
        %870 = vmatprep.subr.mxu0 0.0
        %871 = vmatpush1.msra.mxu0 0.0
        %872 = vmatprep.subr.mxu0 0.0
        %873 = vmatpush1.msra.mxu0 0.0
        %874 = vmatprep.subr.mxu0 0.0
        %875 = vmatpush1.msra.mxu0 0.0
        %876 = vmatprep.subr.mxu0 0.0
        %877 = vmatpush1.msra.mxu0 0.0
        %878 = vmatprep.subr.mxu0 0.0
        %879 = vmatpush1.msra.mxu0 0.0
        %880 = vmatprep.subr.mxu0 0.0
        %881 = vmatpush1.msra.mxu0 0.0
        %882 = vmatprep.subr.mxu0 0.0
        %883 = vmatpush1.msra.mxu0 0.0
        %884 = vmatprep.subr.mxu0 0.0
        %885 = vmatpush1.msra.mxu0 0.0
        %886 = vmatprep.subr.mxu0 0.0
        %887 = vmatpush1.msra.mxu0 0.0
        %888 = vmatprep.subr.mxu0 0.0
        %889 = vmatpush1.msra.mxu0 0.0
        %890 = vmatprep.subr.mxu0 0.0
        %891 = vmatpush1.msra.mxu0 0.0
        %892 = vmatprep.subr.mxu0 0.0
        %893 = vmatpush1.msra.mxu0 0.0
        %894 = vmatprep.subr.mxu0 0.0
        %895 = vmatpush1.msra.mxu0 0.0
        %896 = vmatprep.mubr.f32.mxu0 0.0
        %897 = vmatmul.mubr.f32.gmra.mrb[0].mxu0 %v831
        %v898 = vpop.f32.mrb[0].mxu0
        %v899 = vpop.f32.mrb[0].mxu0
        %v900 = vadd.f32 0.0, %v899
        %901 = vdwg.mxu0
        %vm902 = vcmp.eq.s32.totalorder %v434, %v828
        %v903 = vsel %vm902, 1, 0
        %v904 = vcvt.s32.f32 %v903
        %905 = vset.pattern.permute.xlu0 2
        %906 = vperm.xlu0 %905, %v576
        %v907 = vpop.permute.xlu0 %906
        %v909 = vmul.f32 %v907, %v597
        %v910 = vadd.f32 %v909, 0.0
        %v911 = vmul.f32 %v907, %v598
        %v912 = vadd.f32 %v911, 0.0
        %v913 = vmul.f32 %v904, %v598
        %v914 = vadd.f32 %v900, %v913
        %vm915 = vcmp.eq.s32.totalorder %v621, %v828
        %v916 = vsel %vm915, 1, 0
        %v917 = vcvt.s32.f32 %v916
        %919 = vset.pattern.permute.xlu0 2
        %920 = vperm.xlu0 %919, %v763
        %v921 = vpop.permute.xlu0 %920
        %v923 = vmul.f32 %v921, %v804
        %v924 = vadd.f32 %v910, %v923
        %v925 = vmul.f32 %v921, %v805
        %v926 = vadd.f32 %v912, %v925
        %v927 = vmul.f32 %v917, %v805
        %v928 = vadd.f32 %v914, %v927
        %v929 = vlaneseq
        %v930 = vshrl.u32 %v929, 7
        %v931 = vsub.s32 2, %v930
        %v932 = vrot.slane %v410, %v931
        %v933 = vadd.f32 %v932, %v924
        %v934 = vlaneseq
        %v935 = vshrl.u32 %v934, 7
        %v936 = vsub.s32 2, %v935
        %v937 = vrot.slane %v411, %v936
        %v938 = vadd.f32 %v937, %v926
        %s939 = scalar_lea.vmem %s346, 16 [#allocation8]
        %940 = vst [vmem:[%s939] sm:$0xff] %v933
        %v941 = vlaneseq
        %v942 = vshrl.u32 %v941, 7
        %v943 = vsub.s32 2, %v942
        %v944 = vrot.slane %v408, %v943
        %v945 = vmul.f32 %v812, %v944
        %v946 = vsub.f32 %v800, %v945
        %v947 = vsel %vm829, %v812, %v946
        %v948 = vmul.f32 %v812, %v576
        %950 = vrot.lane.b32.xlu0 %v948, 127
        %v951 = vpop.permute.xlu0 %950
        %v953 = vsub.f32 %v803, %v951
        %v954 = vsel %vm902, %v812, %v953
        %v955 = vmul.f32 %v812, %v763
        %v956 = vsub.f32 %v605, %v955
        %v957 = vsel %vm915, %v812, %v956
        %v958 = vsub.f32 %v938, %v928
        %960 = vset.pattern.permute.xlu0 1
        %961 = vperm.xlu0 %960, %v954
        %v962 = vpop.permute.xlu0 %961
        %v964 = vmul.f32 %v962, %v598
        %965 = vmatprep.subr.mxu0 0.0
        %966 = vmatpush1.msra.mxu0 %v361
        %967 = vmatprep.subr.mxu0 0.0
        %968 = vmatpush1.msra.mxu0 %v364
        %969 = vmatprep.subr.mxu0 0.0
        %970 = vmatpush1.msra.mxu0 %v367
        %971 = vmatprep.subr.mxu0 0.0
        %972 = vmatpush1.msra.mxu0 %v370
        %973 = vmatprep.subr.mxu0 0.0
        %974 = vmatpush1.msra.mxu0 %v373
        %975 = vmatprep.subr.mxu0 0.0
        %976 = vmatpush1.msra.mxu0 %v376
        %977 = vmatprep.subr.mxu0 0.0
        %978 = vmatpush1.msra.mxu0 %v379
        %979 = vmatprep.subr.mxu0 0.0
        %980 = vmatpush1.msra.mxu0 %v382
        %981 = vmatprep.subr.mxu0 0.0
        %982 = vmatpush1.msra.mxu0 %v385
        %983 = vmatprep.subr.mxu0 0.0
        %984 = vmatpush1.msra.mxu0 %v388
        %985 = vmatprep.subr.mxu0 0.0
        %986 = vmatpush1.msra.mxu0 %v391
        %987 = vmatprep.subr.mxu0 0.0
        %988 = vmatpush1.msra.mxu0 %v394
        %989 = vmatprep.subr.mxu0 0.0
        %990 = vmatpush1.msra.mxu0 %v397
        %991 = vmatprep.subr.mxu0 0.0
        %992 = vmatpush1.msra.mxu0 %v400
        %993 = vmatprep.subr.mxu0 0.0
        %994 = vmatpush1.msra.mxu0 %v403
        %995 = vmatprep.subr.mxu0 0.0
        %996 = vmatpush1.msra.mxu0 %v406
        %997 = vmatprep.subr.mxu0 0.0
        %998 = vmatpush1.msra.mxu0 0.0
        %999 = vmatprep.subr.mxu0 0.0
        %1000 = vmatpush1.msra.mxu0 0.0
        %1001 = vmatprep.subr.mxu0 0.0
        %1002 = vmatpush1.msra.mxu0 0.0
        %1003 = vmatprep.subr.mxu0 0.0
        %1004 = vmatpush1.msra.mxu0 0.0
        %1005 = vmatprep.subr.mxu0 0.0
        %1006 = vmatpush1.msra.mxu0 0.0
        %1007 = vmatprep.subr.mxu0 0.0
        %1008 = vmatpush1.msra.mxu0 0.0
        %1009 = vmatprep.subr.mxu0 0.0
        %1010 = vmatpush1.msra.mxu0 0.0
        %1011 = vmatprep.subr.mxu0 0.0
        %1012 = vmatpush1.msra.mxu0 0.0
        %1013 = vmatprep.subr.mxu0 0.0
        %1014 = vmatpush1.msra.mxu0 0.0
        %1015 = vmatprep.subr.mxu0 0.0
        %1016 = vmatpush1.msra.mxu0 0.0
        %1017 = vmatprep.subr.mxu0 0.0
        %1018 = vmatpush1.msra.mxu0 0.0
        %1019 = vmatprep.subr.mxu0 0.0
        %1020 = vmatpush1.msra.mxu0 0.0
        %1021 = vmatprep.subr.mxu0 0.0
        %1022 = vmatpush1.msra.mxu0 0.0
        %1023 = vmatprep.subr.mxu0 0.0
        %1024 = vmatpush1.msra.mxu0 0.0
        %1025 = vmatprep.subr.mxu0 0.0
        %1026 = vmatpush1.msra.mxu0 0.0
        %1027 = vmatprep.subr.mxu0 0.0
        %1028 = vmatpush1.msra.mxu0 0.0
        %1029 = vmatprep.mubr.f32.mxu0 0.0
        %1030 = vmatmul.mubr.f32.gmra.mrb[0].mxu0 %v947
        %v1031 = vpop.f32.mrb[0].mxu0
        %v1032 = vadd.f32 %v964, %v1031
        %v1033 = vpop.f32.mrb[0].mxu0
        %1034 = vdwg.mxu0
        %1036 = vset.pattern.permute.xlu0 2
        %1037 = vperm.xlu0 %1036, %v957
        %v1038 = vpop.permute.xlu0 %1037
        %v1040 = vmul.f32 %v1038, %v805
        %v1041 = vadd.f32 %v1032, %v1040
        %v1042 = vmul.f32 %v812, %v958
        %v1043 = vadd.f32 %v1041, %v1042
        %1044 = vst [vmem:[%s339] sm:$0xff] %v1043
        %vm1045 = vcmp.eq.s32.totalorder %v358, 0
        %v1046 = vsel %vm1045, %v434, 0
        %vm1047 = vcmp.eq.s32.totalorder %v358, 1
        %v1048 = vsel %vm1047, %v621, %v1046
        %vm1049 = vcmp.eq.s32.totalorder %v358, 2
        %v1050 = vsel %vm1049, %v828, %v1048
        %vm1051 = vcmask 23552
        %1052 = vst.msk [vmem:[%s356] sm:$0xff] %vm1051, %v1050
        %s1053 = sand.u32 %s169, 1
        %s1054 = scalar_lea.sflag [#allocation4], %s1053
        %s1055 = sand.u32 %s169, 1
        %s1056 = smul.addr %s1055, 8
        %s1057 = scalar_lea.vmem [#allocation7], %s1056
        %s1058 = sand.u32 %s195, 1
        %s1059 = scalar_lea.sflag [#allocation9], %s1058
        %s1060 = sand.u32 %s195, 1
        %s1061 = smul.addr %s1060, 24
        %s1062 = scalar_lea.vmem [#allocation8], %s1061
        %p1063 = scmp.lt.s32.totalorder %s30, 1
        %s1064 = scalar_select %p1063, %s30, 1
        %s1065 = smul.addr %s1064, 8
        %s1066 = scalar_lea.vmem %s8, %s1065
        // Predicated region
        $region53: #{tpu_custom_call.1} parent=43 // pred_check
          %p1067 = pneg %p179
        $region54: #{tpu_custom_call.1} parent=43 // pred_check_branch
          %1069 = sbr.rel (%p1067) target = $region56
        $region55: #{tpu_custom_call.1} parent=43 // pred_region
          %s1071 = ssub.s32 128, 128
          %1072 = vsyncadd %s1054, %s1071
          %s1073 = smul.addr %s30, 128
          %s1074 = scalar_lea.hbm %s6, %s1073
          %s1076 = sshll.u32 %s1057, 4
          %s1077 = int_to_ptr.vmem [resolvable:$true] %s1076
          %1079 = dma.vmem_to_hbm [thread:$0]  %s1077, 128, %s1074, %s1054
        $region56: #{tpu_custom_call.1} parent=43 // pred_fallthru
          _
        // Predicated region
        $region57: #{tpu_custom_call.1} parent=43 // pred_check
          %p1080 = pneg %p205
        $region58: #{tpu_custom_call.1} parent=43 // pred_check_branch
          %1082 = sbr.rel (%p1080) target = $region60
        $region59: #{tpu_custom_call.1} parent=43 // pred_region
          %s1084 = ssub.s32 384, 384
          %1085 = vsyncadd %s1059, %s1084
          %s1086 = smul.addr %s30, 128
          %s1087 = scalar_lea.hbm %s7, %s1086
          %s1088 = sshll.u32 %s1062, 4
          %s1089 = int_to_ptr.vmem [resolvable:$true] %s1088
          %1094 = dma.vmem_to_hbm [thread:$0]  %s1089, 384, %s1087, %s1059, 128, 256, 8
        $region60: #{tpu_custom_call.1} parent=43 // pred_fallthru
          _
        // Predicated region
        $region61: #{tpu_custom_call.1} parent=43 // pred_check
          %p1095 = pneg %p231
        $region62: #{tpu_custom_call.1} parent=43 // pred_check_branch
          %1097 = sbr.rel (%p1095) target = $region64
        $region63: #{tpu_custom_call.1} parent=43 // pred_region
          _
        $region64: #{tpu_custom_call.1} parent=43 // pred_fallthru
          _
      $region44: #{tpu_custom_call.1} parent=5 // pred_fallthru
        _
      %p1098 = scmp.le.s32.totalorder 2, %s25
      // Predicated region
      $region65: #{tpu_custom_call.1} parent=5 // pred_check
        %p1099 = pneg %p1098
      $region66: #{tpu_custom_call.1} parent=5 // pred_check_branch
        %1101 = sbr.rel (%p1099) target = $region68
      $region67: #{tpu_custom_call.1} parent=5 // pred_region
        %s1102 = ssub.s32 %s25, 2
        // Predicated region
        $region69: #{tpu_custom_call.1} parent=67 // pred_check
          %p1103 = pneg %p185
        $region70: #{tpu_custom_call.1} parent=67 // pred_check_branch
          %1105 = sbr.rel (%p1103) target = $region72
        $region71: #{tpu_custom_call.1} parent=67 // pred_region
          %s1106 = sand.u32 %s170, 1
          %s1107 = scalar_lea.sflag [#allocation4], %s1106
          %s1108 = sand.u32 %s170, 1
          %s1109 = smul.addr %s1108, 8
          %s1110 = scalar_lea.vmem [#allocation7], %s1109
          %1111 = dma.done %s1107, 128
        $region72: #{tpu_custom_call.1} parent=67 // pred_fallthru
          _
        // Predicated region
        $region73: #{tpu_custom_call.1} parent=67 // pred_check
          %p1112 = pneg %p211
        $region74: #{tpu_custom_call.1} parent=67 // pred_check_branch
          %1114 = sbr.rel (%p1112) target = $region76
        $region75: #{tpu_custom_call.1} parent=67 // pred_region
          %s1115 = sand.u32 %s196, 1
          %s1116 = scalar_lea.sflag [#allocation9], %s1115
          %s1117 = sand.u32 %s196, 1
          %s1118 = smul.addr %s1117, 24
          %s1119 = scalar_lea.vmem [#allocation8], %s1118
          %1120 = dma.done %s1116, 384
        $region76: #{tpu_custom_call.1} parent=67 // pred_fallthru
          _
        // Predicated region
        $region77: #{tpu_custom_call.1} parent=67 // pred_check
          %p1121 = pneg %p237
        $region78: #{tpu_custom_call.1} parent=67 // pred_check_branch
          %1123 = sbr.rel (%p1121) target = $region80
        $region79: #{tpu_custom_call.1} parent=67 // pred_region
          %p1124 = scmp.lt.s32.totalorder %s31, 1
          %s1125 = scalar_select %p1124, %s31, 1
          %s1126 = smul.addr %s1125, 8
          %s1127 = scalar_lea.vmem %s8, %s1126
        $region80: #{tpu_custom_call.1} parent=67 // pred_fallthru
          _
      $region68: #{tpu_custom_call.1} parent=5 // pred_fallthru
        _
    $region6: #{tpu_custom_call.1} parent=1 // loop_footer
      %s29 = sadd.s32 1, %s25
    $region7: #{tpu_custom_call.1} parent=1 // loop_footer_branch
      %24 = sbr.rel target = $region3
    $region8: #{tpu_custom_call.1} parent=1 // loop_exit
      _
    %1128 = vsyncpa [#allocation3], 1
    %s1129 = scalar_lea.sflag [#allocation3], 1
    %1130 = vsyncpa %s1129, 1
    %1131 = vsyncpa [#allocation6], 1
    %1132 = vsyncpa [#allocation4], 1
    %s1133 = scalar_lea.sflag [#allocation4], 1
    %1134 = vsyncpa %s1133, 1
    %1135 = vsyncpa [#allocation9], 1
    %s1136 = scalar_lea.sflag [#allocation9], 1
    %1137 = vsyncpa %s1136, 1

</llo_original>
